<compile_context>
chip_gen: v5e
topology: v5e:2x2
jax: 0.10.0
libtpu: 0.0.40
codegen_flags: <defaults>
</compile_context>

<pallas_src>
import functools

import numpy as np
import jax
import jax.numpy as jnp
from jax import lax
from jax.experimental import pallas as pl
from jax.experimental.pallas import tpu as pltpu

# ----------------------------- configuration --------------------------------
B = 2                     # batch
S = 8                     # sequence length
HIDDEN = 32               # base transformer hidden_size
VOCAB = 100               # vocab_size (tokens arrive as HIDDEN-dim features)
NECK = 64                 # neck_size (LSTM hidden size); != HIDDEN -> Linear present
NUM_LAYERS = 2            # LSTM num_layers
HIDDEN_IDXS = [-1]
HIDDEN_LB = 0
TOKEN_LB = 0
NUM_HIDDEN_STATES = 3
# input_size() = hidden_size * (len(hidden_idxs)*(hidden_lb+1) + (token_lb+1))
INPUT_SIZE = HIDDEN * (len(HIDDEN_IDXS) * (HIDDEN_LB + 1) + (TOKEN_LB + 1))  # = 64


# ------------------------------ Pallas kernel --------------------------------
def _lstm_neck_kernel(num_layers, neck, hidden, seq_len, bsz, *refs):
    """refs = (h_last (B*S, hidden) f32, tokens (B*S, hidden) f32,
               w_ih0_hid (hidden,4H) bf16, w_ih0_tok (hidden,4H) bf16,
               w_hh0 (H,4H) bf16, bias0 (1,4H) f32,
               [w_cat_l (2H,4H) bf16, bias_l (1,4H) f32]  for layers 1..L-1,
               w_lin (H, hidden) bf16, b_lin (1, hidden) f32,
               o_ref (S*B, hidden) f32)          gate columns ordered [i | f | o | g]"""
    H = neck
    H2 = 2 * H
    H3 = 3 * H
    H4 = 4 * H
    rows = bsz * seq_len

    h_in_ref = refs[0]
    tok_ref = refs[1]
    w_ih_hid_ref, w_ih_tok_ref, w_hh0_ref, bias0_ref = refs[2:6]
    up_refs = refs[6:6 + 2 * (num_layers - 1)]
    w_lin_ref = refs[6 + 2 * (num_layers - 1)]
    b_lin_ref = refs[7 + 2 * (num_layers - 1)]
    o_ref = refs[8 + 2 * (num_layers - 1)]

    # ---- layer-0 input projection, hoisted & merged over B*S rows (off the chain) ----
    h_flat = h_in_ref[...].astype(jnp.bfloat16)                     # (B*S, hidden)
    t_flat = tok_ref[...].astype(jnp.bfloat16)                      # (B*S, hidden)
    gh = jnp.dot(h_flat, w_ih_hid_ref[...], preferred_element_type=jnp.float32)
    gt = jnp.dot(t_flat, w_ih_tok_ref[...], preferred_element_type=jnp.float32)
    # form_input's shift(tokens, 1) fused via linearity: shift the *projected* token
    # gates one row up within each batch segment, zero row at t = seq_len-1.
    pieces = []
    for b in range(bsz):
        pieces.append(gt[b * seq_len + 1:(b + 1) * seq_len, :])
        pieces.append(jnp.zeros((1, H4), jnp.float32))
    gt_sh = jnp.concatenate(pieces, axis=0)                         # (B*S, 4H)
    gx0 = gh + gt_sh + bias0_ref[...]                               # batch-major, f32

    # per-step (B, 4H) gate rows -- prologue staging, not on the dependent chain
    g0_rows = [
        jnp.concatenate(
            [gx0[b * seq_len + t: b * seq_len + t + 1, :] for b in range(bsz)], axis=0)
        for t in range(seq_len)
    ]

    w_hh0 = w_hh0_ref[...]                                          # (H, 4H) bf16
    w_cat = [up_refs[2 * i][...] for i in range(num_layers - 1)]    # (2H, 4H) bf16
    b_up = [jnp.broadcast_to(up_refs[2 * i + 1][...], (bsz, H4))    # pre-broadcast once
            for i in range(num_layers - 1)]

    def cell(gates, c_prev):
        sig = jax.nn.sigmoid(gates[:, :H3])        # contiguous [i | f | o] block
        g_g = jnp.tanh(gates[:, H3:])              # trailing g block
        c_new = sig[:, H:H2] * c_prev + sig[:, :H] * g_g
        h_new = sig[:, H2:H3] * jnp.tanh(c_new)
        return h_new, c_new

    # ---- wavefront recurrence: layer l handles step (it - l) at iteration it ----
    h = [jnp.zeros((bsz, H), jnp.float32) for _ in range(num_layers)]
    c = [jnp.zeros((bsz, H), jnp.float32) for _ in range(num_layers)]
    out_rows = []
    for it in range(seq_len + num_layers - 1):
        h_prev = list(h)                           # snapshot: both layers read step it-1
        if it < seq_len:                           # layer 0, step it
            g0 = g0_rows[it] + jnp.dot(h_prev[0].astype(jnp.bfloat16), w_hh0,
                                       preferred_element_type=jnp.float32)
            h[0], c[0] = cell(g0, c[0])
            if num_layers == 1:
                out_rows.append(h[0])
        for l in range(1, num_layers):             # layer l, step it - l (fused W_ih)
            t_l = it - l
            if 0 <= t_l < seq_len:
                x = jnp.concatenate([h_prev[l - 1], h_prev[l]],
                                    axis=1).astype(jnp.bfloat16)     # (B, 2H) lane concat
                g = jnp.dot(x, w_cat[l - 1],
                            preferred_element_type=jnp.float32) + b_up[l - 1]
                h[l], c[l] = cell(g, c[l])
                if l == num_layers - 1:
                    out_rows.append(h[l])

    # ---- single fused output Linear over all steps; one full 2-D store ----
    y_in = jnp.concatenate(out_rows, axis=0).astype(jnp.bfloat16)   # (S*B, H) time-major
    y = jnp.dot(y_in, w_lin_ref[...],
                preferred_element_type=jnp.float32) + b_lin_ref[...]
    o_ref[...] = y                                                  # (S*B, HIDDEN)


# ------------------------------ param prep / wrapper ---------------------------
def _reorder_ifog(a):
    """Reorder last-axis gate blocks from PyTorch [i|f|g|o] to kernel [i|f|o|g]."""
    H = NECK
    return jnp.concatenate(
        [a[..., :2 * H], a[..., 3 * H:4 * H], a[..., 2 * H:3 * H]], axis=-1)


def prepare_kernel_params(params):
    """PyTorch-layout params -> kernel layout:
       combined bias, [i|f|o|g] gate columns, bf16 matmul weights, fused [W_ih;W_hh]
       for layers >= 1, W_ih0 split into hidden-feature / token-feature row blocks."""
    (w_ih0, w_hh0, b_ih0, b_hh0) = params["layers"][0]
    w_ih0 = _reorder_ifog(w_ih0)                                    # (INPUT_SIZE, 4H)
    out = {
        "w_ih0_hid": w_ih0[:HIDDEN, :].astype(jnp.bfloat16),
        "w_ih0_tok": w_ih0[HIDDEN:, :].astype(jnp.bfloat16),
        "w_hh0": _reorder_ifog(w_hh0).astype(jnp.bfloat16),
        "bias0": _reorder_ifog(b_ih0 + b_hh0),                      # f32
        "upper": [],
        "w_lin": params["w_lin_t"].astype(jnp.bfloat16),
        "b_lin": params["b_lin"],                                   # f32
    }
    for (w_ih, w_hh, b_ih, b_hh) in params["layers"][1:]:
        w_cat = jnp.concatenate([_reorder_ifog(w_ih), _reorder_ifog(w_hh)],
                                axis=0).astype(jnp.bfloat16)        # (2H, 4H)
        out["upper"].append((w_cat, _reorder_ifog(b_ih + b_hh)))
    return out


def lstm_neck_pallas(hidden_states, tokens, kparams):
    # hidden_idxs=[-1], hidden_lb=0 -> only hidden_states[-1] is consumed, unshifted.
    # The batch-dim flatten is a free, memory-order-preserving view.
    h_last = hidden_states[-1].astype(jnp.float32).reshape(B * S, HIDDEN)
    tok = tokens.astype(jnp.float32).reshape(B * S, HIDDEN)

    flat = [kparams["w_ih0_hid"], kparams["w_ih0_tok"],
            kparams["w_hh0"], kparams["bias0"]]
    for (w_cat, bias) in kparams["upper"]:
        flat += [w_cat, bias]
    flat += [kparams["w_lin"], kparams["b_lin"]]
    n_in = 2 + len(flat)

    kernel = functools.partial(_lstm_neck_kernel, NUM_LAYERS, NECK, HIDDEN, S, B)
    out = pl.pallas_call(
        kernel,
        out_shape=jax.ShapeDtypeStruct((S * B, HIDDEN), jnp.float32),
        in_specs=[pl.BlockSpec(memory_space=pltpu.MemorySpace.VMEM)] * n_in,
        out_specs=pl.BlockSpec(memory_space=pltpu.MemorySpace.VMEM),
    )(h_last, tok, *flat)                                            # (S*B, HIDDEN)
    # time-major (t, b) rows -> batch-first (B, S, HIDDEN): pure layout plumbing.
    return out.reshape(S, B, HIDDEN).transpose(1, 0, 2)


# ----------------------- pure-JAX reference (for checking) --------------------
def form_input(hidden_states, tokens):
    """Neck.form_input for hidden_lb=0, token_lb=0 (batch-first tensors)."""
    n = len(hidden_states)
    idxs = sorted([i % n for i in HIDDEN_IDXS], reverse=True)
    state = [hidden_states[i] for i in idxs]                        # shift(h, 0) == h
    tok_shift = jnp.concatenate(
        [tokens[:, 1:, :], jnp.zeros_like(tokens[:, :1, :])], axis=1)
    state.append(tok_shift)
    return jnp.concatenate(state, axis=2).astype(jnp.float32)


def lstm_neck_ref(hidden_states, tokens, params):
    x = form_input(hidden_states, tokens)                           # (B, S, In)
    h_seq = x
    for (w_ih_t, w_hh_t, b_ih, b_hh) in params["layers"]:
        H = NECK
        bsz = h_seq.shape[0]

        def step(carry, x_t):
            h, c = carry
            gates = x_t @ w_ih_t + h @ w_hh_t + b_ih + b_hh
            i_g = jax.nn.sigmoid(gates[:, 0:H])
            f_g = jax.nn.sigmoid(gates[:, H:2 * H])
            g_g = jnp.tanh(gates[:, 2 * H:3 * H])
            o_g = jax.nn.sigmoid(gates[:, 3 * H:4 * H])
            c = f_g * c + i_g * g_g
            h = o_g * jnp.tanh(c)
            return (h, c), h

        xs = jnp.transpose(h_seq, (1, 0, 2))
        (_, _), hs = lax.scan(step, (jnp.zeros((bsz, H)), jnp.zeros((bsz, H))), xs)
        h_seq = jnp.transpose(hs, (1, 0, 2))
    return h_seq @ params["w_lin_t"] + params["b_lin"]


# ----------------------------- parameter init ---------------------------------
def init_params(key):
    """Deterministic init mimicking PyTorch LSTM/Linear U(-1/sqrt(H), 1/sqrt(H))."""
    stdv = 1.0 / float(np.sqrt(NECK))
    layers = []
    in_size = INPUT_SIZE
    for _ in range(NUM_LAYERS):
        key, k1, k2, k3, k4 = jax.random.split(key, 5)
        w_ih = jax.random.uniform(k1, (4 * NECK, in_size), jnp.float32, -stdv, stdv)
        w_hh = jax.random.uniform(k2, (4 * NECK, NECK), jnp.float32, -stdv, stdv)
        b_ih = jax.random.uniform(k3, (4 * NECK,), jnp.float32, -stdv, stdv)
        b_hh = jax.random.uniform(k4, (4 * NECK,), jnp.float32, -stdv, stdv)
        layers.append((w_ih.T, w_hh.T, b_ih.reshape(1, -1), b_hh.reshape(1, -1)))
        in_size = NECK
    key, k5, k6 = jax.random.split(key, 3)
    lin_std = 1.0 / float(np.sqrt(NECK))
    w_lin = jax.random.uniform(k5, (HIDDEN, NECK), jnp.float32, -lin_std, lin_std)
    b_lin = jax.random.uniform(k6, (HIDDEN,), jnp.float32, -lin_std, lin_std)
    return {"layers": layers, "w_lin_t": w_lin.T, "b_lin": b_lin.reshape(1, -1)}


# ---------------------------------- main ---------------------------------------
if __name__ == "__main__":
    key = jax.random.PRNGKey(0)
    keys = jax.random.split(key, NUM_HIDDEN_STATES + 1)
    hidden_states = [
        jax.random.normal(keys[i], (B, S, HIDDEN), jnp.float32)
        for i in range(NUM_HIDDEN_STATES)
    ]
    # tokens enter the neck as HIDDEN-dim features (per Neck.input_size())
    tokens = jax.random.normal(keys[-1], (B, S, HIDDEN), jnp.float32)

    params = init_params(jax.random.PRNGKey(42))
    kparams = prepare_kernel_params(params)

    out = lstm_neck_pallas(hidden_states, tokens, kparams)
    out = jax.block_until_ready(out)
    assert out.shape == (B, S, HIDDEN)

    ref = lstm_neck_ref(hidden_states, tokens, params)
    np.testing.assert_allclose(np.asarray(out), np.asarray(ref), atol=2e-2, rtol=2e-2)

    print("KERNEL_OK")
</pallas_src>

<mosaic_0001>
module attributes {stable_mosaic.version = 11 : i64} {
  func.func @_lstm_neck_kernel(%arg0: memref<16x32xf32, #tpu.memory_space<vmem>>, %arg1: memref<16x32xf32, #tpu.memory_space<vmem>>, %arg2: memref<32x256xbf16, #tpu.memory_space<vmem>>, %arg3: memref<32x256xbf16, #tpu.memory_space<vmem>>, %arg4: memref<64x256xbf16, #tpu.memory_space<vmem>>, %arg5: memref<1x256xf32, #tpu.memory_space<vmem>>, %arg6: memref<128x256xbf16, #tpu.memory_space<vmem>>, %arg7: memref<1x256xf32, #tpu.memory_space<vmem>>, %arg8: memref<64x32xbf16, #tpu.memory_space<vmem>>, %arg9: memref<1x32xf32, #tpu.memory_space<vmem>>, %arg10: memref<16x32xf32, #tpu.memory_space<vmem>>) attributes {dimension_semantics = [], scalar_prefetch = 0 : i64, scratch_operands = 0 : i64, tpu.core_type = #tpu.core_type<tc>} {
    %c0 = arith.constant 0 : index
    %c0_0 = arith.constant 0 : index
    %0 = vector.load %arg0[%c0, %c0_0] : memref<16x32xf32, #tpu.memory_space<vmem>>, vector<16x32xf32>
    %1 = arith.truncf %0 : vector<16x32xf32> to vector<16x32xbf16>
    %c0_1 = arith.constant 0 : index
    %c0_2 = arith.constant 0 : index
    %2 = vector.load %arg1[%c0_1, %c0_2] : memref<16x32xf32, #tpu.memory_space<vmem>>, vector<16x32xf32>
    %3 = arith.truncf %2 : vector<16x32xf32> to vector<16x32xbf16>
    %c0_3 = arith.constant 0 : index
    %c0_4 = arith.constant 0 : index
    %4 = vector.load %arg2[%c0_3, %c0_4] : memref<32x256xbf16, #tpu.memory_space<vmem>>, vector<32x256xbf16>
    %cst = arith.constant dense<0.000000e+00> : vector<16x256xf32>
    %5 = tpu.matmul %1, %4, %cst {dimension_numbers = #tpu.dot_dimension_numbers<[1], [0], [0], [1], [0, 0, 1, 1], [], []>} : vector<16x32xbf16>, vector<32x256xbf16>, vector<16x256xf32> -> vector<16x256xf32>
    %c0_5 = arith.constant 0 : index
    %c0_6 = arith.constant 0 : index
    %6 = vector.load %arg3[%c0_5, %c0_6] : memref<32x256xbf16, #tpu.memory_space<vmem>>, vector<32x256xbf16>
    %cst_7 = arith.constant dense<0.000000e+00> : vector<16x256xf32>
    %7 = tpu.matmul %3, %6, %cst_7 {dimension_numbers = #tpu.dot_dimension_numbers<[1], [0], [0], [1], [0, 0, 1, 1], [], []>} : vector<16x32xbf16>, vector<32x256xbf16>, vector<16x256xf32> -> vector<16x256xf32>
    %8 = vector.extract_strided_slice %7 {offsets = [1, 0], sizes = [7, 256], strides = [1, 1]} : vector<16x256xf32> to vector<7x256xf32>
    %cst_8 = arith.constant 0.000000e+00 : f32
    %9 = vector.broadcast %cst_8 : f32 to vector<1x256xf32>
    %10 = vector.extract_strided_slice %7 {offsets = [9, 0], sizes = [7, 256], strides = [1, 1]} : vector<16x256xf32> to vector<7x256xf32>
    %cst_9 = arith.constant 0.000000e+00 : f32
    %11 = vector.broadcast %cst_9 : f32 to vector<1x256xf32>
    %12 = tpu.concatenate %8, %9, %10, %11 in 0 : vector<7x256xf32>, vector<1x256xf32>, vector<7x256xf32>, vector<1x256xf32> -> vector<16x256xf32>
    %13 = arith.addf %5, %12 : vector<16x256xf32>
    %c0_10 = arith.constant 0 : index
    %c0_11 = arith.constant 0 : index
    %14 = vector.load %arg5[%c0_10, %c0_11] : memref<1x256xf32, #tpu.memory_space<vmem>>, vector<1x256xf32>
    %15 = vector.broadcast %14 : vector<1x256xf32> to vector<16x256xf32>
    %16 = arith.addf %13, %15 : vector<16x256xf32>
    %17 = vector.extract_strided_slice %16 {offsets = [0, 0], sizes = [1, 256], strides = [1, 1]} : vector<16x256xf32> to vector<1x256xf32>
    %18 = vector.extract_strided_slice %16 {offsets = [8, 0], sizes = [1, 256], strides = [1, 1]} : vector<16x256xf32> to vector<1x256xf32>
    %19 = tpu.concatenate %17, %18 in 0 : vector<1x256xf32>, vector<1x256xf32> -> vector<2x256xf32>
    %20 = vector.extract_strided_slice %16 {offsets = [1, 0], sizes = [1, 256], strides = [1, 1]} : vector<16x256xf32> to vector<1x256xf32>
    %21 = vector.extract_strided_slice %16 {offsets = [9, 0], sizes = [1, 256], strides = [1, 1]} : vector<16x256xf32> to vector<1x256xf32>
    %22 = tpu.concatenate %20, %21 in 0 : vector<1x256xf32>, vector<1x256xf32> -> vector<2x256xf32>
    %23 = vector.extract_strided_slice %16 {offsets = [2, 0], sizes = [1, 256], strides = [1, 1]} : vector<16x256xf32> to vector<1x256xf32>
    %24 = vector.extract_strided_slice %16 {offsets = [10, 0], sizes = [1, 256], strides = [1, 1]} : vector<16x256xf32> to vector<1x256xf32>
    %25 = tpu.concatenate %23, %24 in 0 : vector<1x256xf32>, vector<1x256xf32> -> vector<2x256xf32>
    %26 = vector.extract_strided_slice %16 {offsets = [3, 0], sizes = [1, 256], strides = [1, 1]} : vector<16x256xf32> to vector<1x256xf32>
    %27 = vector.extract_strided_slice %16 {offsets = [11, 0], sizes = [1, 256], strides = [1, 1]} : vector<16x256xf32> to vector<1x256xf32>
    %28 = tpu.concatenate %26, %27 in 0 : vector<1x256xf32>, vector<1x256xf32> -> vector<2x256xf32>
    %29 = vector.extract_strided_slice %16 {offsets = [4, 0], sizes = [1, 256], strides = [1, 1]} : vector<16x256xf32> to vector<1x256xf32>
    %30 = vector.extract_strided_slice %16 {offsets = [12, 0], sizes = [1, 256], strides = [1, 1]} : vector<16x256xf32> to vector<1x256xf32>
    %31 = tpu.concatenate %29, %30 in 0 : vector<1x256xf32>, vector<1x256xf32> -> vector<2x256xf32>
    %32 = vector.extract_strided_slice %16 {offsets = [5, 0], sizes = [1, 256], strides = [1, 1]} : vector<16x256xf32> to vector<1x256xf32>
    %33 = vector.extract_strided_slice %16 {offsets = [13, 0], sizes = [1, 256], strides = [1, 1]} : vector<16x256xf32> to vector<1x256xf32>
    %34 = tpu.concatenate %32, %33 in 0 : vector<1x256xf32>, vector<1x256xf32> -> vector<2x256xf32>
    %35 = vector.extract_strided_slice %16 {offsets = [6, 0], sizes = [1, 256], strides = [1, 1]} : vector<16x256xf32> to vector<1x256xf32>
    %36 = vector.extract_strided_slice %16 {offsets = [14, 0], sizes = [1, 256], strides = [1, 1]} : vector<16x256xf32> to vector<1x256xf32>
    %37 = tpu.concatenate %35, %36 in 0 : vector<1x256xf32>, vector<1x256xf32> -> vector<2x256xf32>
    %38 = vector.extract_strided_slice %16 {offsets = [7, 0], sizes = [1, 256], strides = [1, 1]} : vector<16x256xf32> to vector<1x256xf32>
    %39 = vector.extract_strided_slice %16 {offsets = [15, 0], sizes = [1, 256], strides = [1, 1]} : vector<16x256xf32> to vector<1x256xf32>
    %40 = tpu.concatenate %38, %39 in 0 : vector<1x256xf32>, vector<1x256xf32> -> vector<2x256xf32>
    %c0_12 = arith.constant 0 : index
    %c0_13 = arith.constant 0 : index
    %41 = vector.load %arg4[%c0_12, %c0_13] : memref<64x256xbf16, #tpu.memory_space<vmem>>, vector<64x256xbf16>
    %c0_14 = arith.constant 0 : index
    %c0_15 = arith.constant 0 : index
    %42 = vector.load %arg6[%c0_14, %c0_15] : memref<128x256xbf16, #tpu.memory_space<vmem>>, vector<128x256xbf16>
    %c0_16 = arith.constant 0 : index
    %c0_17 = arith.constant 0 : index
    %43 = vector.load %arg7[%c0_16, %c0_17] : memref<1x256xf32, #tpu.memory_space<vmem>>, vector<1x256xf32>
    %44 = vector.shape_cast %43 : vector<1x256xf32> to vector<1x256xf32>
    %45 = vector.broadcast %44 : vector<1x256xf32> to vector<2x256xf32>
    %cst_18 = arith.constant 0.000000e+00 : f32
    %46 = vector.broadcast %cst_18 : f32 to vector<2x64xf32>
    %cst_19 = arith.constant 0.000000e+00 : f32
    %47 = vector.broadcast %cst_19 : f32 to vector<2x64xf32>
    %cst_20 = arith.constant 0.000000e+00 : f32
    %48 = vector.broadcast %cst_20 : f32 to vector<2x64xf32>
    %cst_21 = arith.constant 0.000000e+00 : f32
    %49 = vector.broadcast %cst_21 : f32 to vector<2x64xf32>
    %50 = arith.truncf %46 : vector<2x64xf32> to vector<2x64xbf16>
    %cst_22 = arith.constant dense<0.000000e+00> : vector<2x256xf32>
    %51 = tpu.matmul %50, %41, %cst_22 {dimension_numbers = #tpu.dot_dimension_numbers<[1], [0], [0], [1], [0, 0, 1, 1], [], []>} : vector<2x64xbf16>, vector<64x256xbf16>, vector<2x256xf32> -> vector<2x256xf32>
    %52 = arith.addf %19, %51 : vector<2x256xf32>
    %53 = vector.extract_strided_slice %52 {offsets = [0, 0], sizes = [2, 192], strides = [1, 1]} : vector<2x256xf32> to vector<2x192xf32>
    %54 = arith.negf %53 : vector<2x192xf32>
    %55 = math.exp %54 : vector<2x192xf32>
    %cst_23 = arith.constant 1.000000e+00 : f32
    %56 = vector.broadcast %cst_23 : f32 to vector<2x192xf32>
    %57 = arith.addf %56, %55 : vector<2x192xf32>
    %58 = arith.divf %56, %57 : vector<2x192xf32>
    %59 = vector.extract_strided_slice %52 {offsets = [0, 192], sizes = [2, 64], strides = [1, 1]} : vector<2x256xf32> to vector<2x64xf32>
    %60 = math.tanh %59 : vector<2x64xf32>
    %61 = vector.extract_strided_slice %58 {offsets = [0, 64], sizes = [2, 64], strides = [1, 1]} : vector<2x192xf32> to vector<2x64xf32>
    %62 = arith.mulf %61, %48 : vector<2x64xf32>
    %63 = vector.extract_strided_slice %58 {offsets = [0, 0], sizes = [2, 64], strides = [1, 1]} : vector<2x192xf32> to vector<2x64xf32>
    %64 = arith.mulf %63, %60 : vector<2x64xf32>
    %65 = arith.addf %62, %64 : vector<2x64xf32>
    %66 = vector.extract_strided_slice %58 {offsets = [0, 128], sizes = [2, 64], strides = [1, 1]} : vector<2x192xf32> to vector<2x64xf32>
    %67 = math.tanh %65 : vector<2x64xf32>
    %68 = arith.mulf %66, %67 : vector<2x64xf32>
    %69 = arith.truncf %68 : vector<2x64xf32> to vector<2x64xbf16>
    %cst_24 = arith.constant dense<0.000000e+00> : vector<2x256xf32>
    %70 = tpu.matmul %69, %41, %cst_24 {dimension_numbers = #tpu.dot_dimension_numbers<[1], [0], [0], [1], [0, 0, 1, 1], [], []>} : vector<2x64xbf16>, vector<64x256xbf16>, vector<2x256xf32> -> vector<2x256xf32>
    %71 = arith.addf %22, %70 : vector<2x256xf32>
    %72 = vector.extract_strided_slice %71 {offsets = [0, 0], sizes = [2, 192], strides = [1, 1]} : vector<2x256xf32> to vector<2x192xf32>
    %73 = arith.negf %72 : vector<2x192xf32>
    %74 = math.exp %73 : vector<2x192xf32>
    %cst_25 = arith.constant 1.000000e+00 : f32
    %75 = vector.broadcast %cst_25 : f32 to vector<2x192xf32>
    %76 = arith.addf %75, %74 : vector<2x192xf32>
    %77 = arith.divf %75, %76 : vector<2x192xf32>
    %78 = vector.extract_strided_slice %71 {offsets = [0, 192], sizes = [2, 64], strides = [1, 1]} : vector<2x256xf32> to vector<2x64xf32>
    %79 = math.tanh %78 : vector<2x64xf32>
    %80 = vector.extract_strided_slice %77 {offsets = [0, 64], sizes = [2, 64], strides = [1, 1]} : vector<2x192xf32> to vector<2x64xf32>
    %81 = arith.mulf %80, %65 : vector<2x64xf32>
    %82 = vector.extract_strided_slice %77 {offsets = [0, 0], sizes = [2, 64], strides = [1, 1]} : vector<2x192xf32> to vector<2x64xf32>
    %83 = arith.mulf %82, %79 : vector<2x64xf32>
    %84 = arith.addf %81, %83 : vector<2x64xf32>
    %85 = vector.extract_strided_slice %77 {offsets = [0, 128], sizes = [2, 64], strides = [1, 1]} : vector<2x192xf32> to vector<2x64xf32>
    %86 = math.tanh %84 : vector<2x64xf32>
    %87 = arith.mulf %85, %86 : vector<2x64xf32>
    %88 = tpu.concatenate %68, %47 in 1 : vector<2x64xf32>, vector<2x64xf32> -> vector<2x128xf32>
    %89 = arith.truncf %88 : vector<2x128xf32> to vector<2x128xbf16>
    %cst_26 = arith.constant dense<0.000000e+00> : vector<2x256xf32>
    %90 = tpu.matmul %89, %42, %cst_26 {dimension_numbers = #tpu.dot_dimension_numbers<[1], [0], [0], [1], [0, 0, 1, 1], [], []>} : vector<2x128xbf16>, vector<128x256xbf16>, vector<2x256xf32> -> vector<2x256xf32>
    %91 = arith.addf %90, %45 : vector<2x256xf32>
    %92 = vector.extract_strided_slice %91 {offsets = [0, 0], sizes = [2, 192], strides = [1, 1]} : vector<2x256xf32> to vector<2x192xf32>
    %93 = arith.negf %92 : vector<2x192xf32>
    %94 = math.exp %93 : vector<2x192xf32>
    %cst_27 = arith.constant 1.000000e+00 : f32
    %95 = vector.broadcast %cst_27 : f32 to vector<2x192xf32>
    %96 = arith.addf %95, %94 : vector<2x192xf32>
    %97 = arith.divf %95, %96 : vector<2x192xf32>
    %98 = vector.extract_strided_slice %91 {offsets = [0, 192], sizes = [2, 64], strides = [1, 1]} : vector<2x256xf32> to vector<2x64xf32>
    %99 = math.tanh %98 : vector<2x64xf32>
    %100 = vector.extract_strided_slice %97 {offsets = [0, 64], sizes = [2, 64], strides = [1, 1]} : vector<2x192xf32> to vector<2x64xf32>
    %101 = arith.mulf %100, %49 : vector<2x64xf32>
    %102 = vector.extract_strided_slice %97 {offsets = [0, 0], sizes = [2, 64], strides = [1, 1]} : vector<2x192xf32> to vector<2x64xf32>
    %103 = arith.mulf %102, %99 : vector<2x64xf32>
    %104 = arith.addf %101, %103 : vector<2x64xf32>
    %105 = vector.extract_strided_slice %97 {offsets = [0, 128], sizes = [2, 64], strides = [1, 1]} : vector<2x192xf32> to vector<2x64xf32>
    %106 = math.tanh %104 : vector<2x64xf32>
    %107 = arith.mulf %105, %106 : vector<2x64xf32>
    %108 = arith.truncf %87 : vector<2x64xf32> to vector<2x64xbf16>
    %cst_28 = arith.constant dense<0.000000e+00> : vector<2x256xf32>
    %109 = tpu.matmul %108, %41, %cst_28 {dimension_numbers = #tpu.dot_dimension_numbers<[1], [0], [0], [1], [0, 0, 1, 1], [], []>} : vector<2x64xbf16>, vector<64x256xbf16>, vector<2x256xf32> -> vector<2x256xf32>
    %110 = arith.addf %25, %109 : vector<2x256xf32>
    %111 = vector.extract_strided_slice %110 {offsets = [0, 0], sizes = [2, 192], strides = [1, 1]} : vector<2x256xf32> to vector<2x192xf32>
    %112 = arith.negf %111 : vector<2x192xf32>
    %113 = math.exp %112 : vector<2x192xf32>
    %cst_29 = arith.constant 1.000000e+00 : f32
    %114 = vector.broadcast %cst_29 : f32 to vector<2x192xf32>
    %115 = arith.addf %114, %113 : vector<2x192xf32>
    %116 = arith.divf %114, %115 : vector<2x192xf32>
    %117 = vector.extract_strided_slice %110 {offsets = [0, 192], sizes = [2, 64], strides = [1, 1]} : vector<2x256xf32> to vector<2x64xf32>
    %118 = math.tanh %117 : vector<2x64xf32>
    %119 = vector.extract_strided_slice %116 {offsets = [0, 64], sizes = [2, 64], strides = [1, 1]} : vector<2x192xf32> to vector<2x64xf32>
    %120 = arith.mulf %119, %84 : vector<2x64xf32>
    %121 = vector.extract_strided_slice %116 {offsets = [0, 0], sizes = [2, 64], strides = [1, 1]} : vector<2x192xf32> to vector<2x64xf32>
    %122 = arith.mulf %121, %118 : vector<2x64xf32>
    %123 = arith.addf %120, %122 : vector<2x64xf32>
    %124 = vector.extract_strided_slice %116 {offsets = [0, 128], sizes = [2, 64], strides = [1, 1]} : vector<2x192xf32> to vector<2x64xf32>
    %125 = math.tanh %123 : vector<2x64xf32>
    %126 = arith.mulf %124, %125 : vector<2x64xf32>
    %127 = tpu.concatenate %87, %107 in 1 : vector<2x64xf32>, vector<2x64xf32> -> vector<2x128xf32>
    %128 = arith.truncf %127 : vector<2x128xf32> to vector<2x128xbf16>
    %cst_30 = arith.constant dense<0.000000e+00> : vector<2x256xf32>
    %129 = tpu.matmul %128, %42, %cst_30 {dimension_numbers = #tpu.dot_dimension_numbers<[1], [0], [0], [1], [0, 0, 1, 1], [], []>} : vector<2x128xbf16>, vector<128x256xbf16>, vector<2x256xf32> -> vector<2x256xf32>
    %130 = arith.addf %129, %45 : vector<2x256xf32>
    %131 = vector.extract_strided_slice %130 {offsets = [0, 0], sizes = [2, 192], strides = [1, 1]} : vector<2x256xf32> to vector<2x192xf32>
    %132 = arith.negf %131 : vector<2x192xf32>
    %133 = math.exp %132 : vector<2x192xf32>
    %cst_31 = arith.constant 1.000000e+00 : f32
    %134 = vector.broadcast %cst_31 : f32 to vector<2x192xf32>
    %135 = arith.addf %134, %133 : vector<2x192xf32>
    %136 = arith.divf %134, %135 : vector<2x192xf32>
    %137 = vector.extract_strided_slice %130 {offsets = [0, 192], sizes = [2, 64], strides = [1, 1]} : vector<2x256xf32> to vector<2x64xf32>
    %138 = math.tanh %137 : vector<2x64xf32>
    %139 = vector.extract_strided_slice %136 {offsets = [0, 64], sizes = [2, 64], strides = [1, 1]} : vector<2x192xf32> to vector<2x64xf32>
    %140 = arith.mulf %139, %104 : vector<2x64xf32>
    %141 = vector.extract_strided_slice %136 {offsets = [0, 0], sizes = [2, 64], strides = [1, 1]} : vector<2x192xf32> to vector<2x64xf32>
    %142 = arith.mulf %141, %138 : vector<2x64xf32>
    %143 = arith.addf %140, %142 : vector<2x64xf32>
    %144 = vector.extract_strided_slice %136 {offsets = [0, 128], sizes = [2, 64], strides = [1, 1]} : vector<2x192xf32> to vector<2x64xf32>
    %145 = math.tanh %143 : vector<2x64xf32>
    %146 = arith.mulf %144, %145 : vector<2x64xf32>
    %147 = arith.truncf %126 : vector<2x64xf32> to vector<2x64xbf16>
    %cst_32 = arith.constant dense<0.000000e+00> : vector<2x256xf32>
    %148 = tpu.matmul %147, %41, %cst_32 {dimension_numbers = #tpu.dot_dimension_numbers<[1], [0], [0], [1], [0, 0, 1, 1], [], []>} : vector<2x64xbf16>, vector<64x256xbf16>, vector<2x256xf32> -> vector<2x256xf32>
    %149 = arith.addf %28, %148 : vector<2x256xf32>
    %150 = vector.extract_strided_slice %149 {offsets = [0, 0], sizes = [2, 192], strides = [1, 1]} : vector<2x256xf32> to vector<2x192xf32>
    %151 = arith.negf %150 : vector<2x192xf32>
    %152 = math.exp %151 : vector<2x192xf32>
    %cst_33 = arith.constant 1.000000e+00 : f32
    %153 = vector.broadcast %cst_33 : f32 to vector<2x192xf32>
    %154 = arith.addf %153, %152 : vector<2x192xf32>
    %155 = arith.divf %153, %154 : vector<2x192xf32>
    %156 = vector.extract_strided_slice %149 {offsets = [0, 192], sizes = [2, 64], strides = [1, 1]} : vector<2x256xf32> to vector<2x64xf32>
    %157 = math.tanh %156 : vector<2x64xf32>
    %158 = vector.extract_strided_slice %155 {offsets = [0, 64], sizes = [2, 64], strides = [1, 1]} : vector<2x192xf32> to vector<2x64xf32>
    %159 = arith.mulf %158, %123 : vector<2x64xf32>
    %160 = vector.extract_strided_slice %155 {offsets = [0, 0], sizes = [2, 64], strides = [1, 1]} : vector<2x192xf32> to vector<2x64xf32>
    %161 = arith.mulf %160, %157 : vector<2x64xf32>
    %162 = arith.addf %159, %161 : vector<2x64xf32>
    %163 = vector.extract_strided_slice %155 {offsets = [0, 128], sizes = [2, 64], strides = [1, 1]} : vector<2x192xf32> to vector<2x64xf32>
    %164 = math.tanh %162 : vector<2x64xf32>
    %165 = arith.mulf %163, %164 : vector<2x64xf32>
    %166 = tpu.concatenate %126, %146 in 1 : vector<2x64xf32>, vector<2x64xf32> -> vector<2x128xf32>
    %167 = arith.truncf %166 : vector<2x128xf32> to vector<2x128xbf16>
    %cst_34 = arith.constant dense<0.000000e+00> : vector<2x256xf32>
    %168 = tpu.matmul %167, %42, %cst_34 {dimension_numbers = #tpu.dot_dimension_numbers<[1], [0], [0], [1], [0, 0, 1, 1], [], []>} : vector<2x128xbf16>, vector<128x256xbf16>, vector<2x256xf32> -> vector<2x256xf32>
    %169 = arith.addf %168, %45 : vector<2x256xf32>
    %170 = vector.extract_strided_slice %169 {offsets = [0, 0], sizes = [2, 192], strides = [1, 1]} : vector<2x256xf32> to vector<2x192xf32>
    %171 = arith.negf %170 : vector<2x192xf32>
    %172 = math.exp %171 : vector<2x192xf32>
    %cst_35 = arith.constant 1.000000e+00 : f32
    %173 = vector.broadcast %cst_35 : f32 to vector<2x192xf32>
    %174 = arith.addf %173, %172 : vector<2x192xf32>
    %175 = arith.divf %173, %174 : vector<2x192xf32>
    %176 = vector.extract_strided_slice %169 {offsets = [0, 192], sizes = [2, 64], strides = [1, 1]} : vector<2x256xf32> to vector<2x64xf32>
    %177 = math.tanh %176 : vector<2x64xf32>
    %178 = vector.extract_strided_slice %175 {offsets = [0, 64], sizes = [2, 64], strides = [1, 1]} : vector<2x192xf32> to vector<2x64xf32>
    %179 = arith.mulf %178, %143 : vector<2x64xf32>
    %180 = vector.extract_strided_slice %175 {offsets = [0, 0], sizes = [2, 64], strides = [1, 1]} : vector<2x192xf32> to vector<2x64xf32>
    %181 = arith.mulf %180, %177 : vector<2x64xf32>
    %182 = arith.addf %179, %181 : vector<2x64xf32>
    %183 = vector.extract_strided_slice %175 {offsets = [0, 128], sizes = [2, 64], strides = [1, 1]} : vector<2x192xf32> to vector<2x64xf32>
    %184 = math.tanh %182 : vector<2x64xf32>
    %185 = arith.mulf %183, %184 : vector<2x64xf32>
    %186 = arith.truncf %165 : vector<2x64xf32> to vector<2x64xbf16>
    %cst_36 = arith.constant dense<0.000000e+00> : vector<2x256xf32>
    %187 = tpu.matmul %186, %41, %cst_36 {dimension_numbers = #tpu.dot_dimension_numbers<[1], [0], [0], [1], [0, 0, 1, 1], [], []>} : vector<2x64xbf16>, vector<64x256xbf16>, vector<2x256xf32> -> vector<2x256xf32>
    %188 = arith.addf %31, %187 : vector<2x256xf32>
    %189 = vector.extract_strided_slice %188 {offsets = [0, 0], sizes = [2, 192], strides = [1, 1]} : vector<2x256xf32> to vector<2x192xf32>
    %190 = arith.negf %189 : vector<2x192xf32>
    %191 = math.exp %190 : vector<2x192xf32>
    %cst_37 = arith.constant 1.000000e+00 : f32
    %192 = vector.broadcast %cst_37 : f32 to vector<2x192xf32>
    %193 = arith.addf %192, %191 : vector<2x192xf32>
    %194 = arith.divf %192, %193 : vector<2x192xf32>
    %195 = vector.extract_strided_slice %188 {offsets = [0, 192], sizes = [2, 64], strides = [1, 1]} : vector<2x256xf32> to vector<2x64xf32>
    %196 = math.tanh %195 : vector<2x64xf32>
    %197 = vector.extract_strided_slice %194 {offsets = [0, 64], sizes = [2, 64], strides = [1, 1]} : vector<2x192xf32> to vector<2x64xf32>
    %198 = arith.mulf %197, %162 : vector<2x64xf32>
    %199 = vector.extract_strided_slice %194 {offsets = [0, 0], sizes = [2, 64], strides = [1, 1]} : vector<2x192xf32> to vector<2x64xf32>
    %200 = arith.mulf %199, %196 : vector<2x64xf32>
    %201 = arith.addf %198, %200 : vector<2x64xf32>
    %202 = vector.extract_strided_slice %194 {offsets = [0, 128], sizes = [2, 64], strides = [1, 1]} : vector<2x192xf32> to vector<2x64xf32>
    %203 = math.tanh %201 : vector<2x64xf32>
    %204 = arith.mulf %202, %203 : vector<2x64xf32>
    %205 = tpu.concatenate %165, %185 in 1 : vector<2x64xf32>, vector<2x64xf32> -> vector<2x128xf32>
    %206 = arith.truncf %205 : vector<2x128xf32> to vector<2x128xbf16>
    %cst_38 = arith.constant dense<0.000000e+00> : vector<2x256xf32>
    %207 = tpu.matmul %206, %42, %cst_38 {dimension_numbers = #tpu.dot_dimension_numbers<[1], [0], [0], [1], [0, 0, 1, 1], [], []>} : vector<2x128xbf16>, vector<128x256xbf16>, vector<2x256xf32> -> vector<2x256xf32>
    %208 = arith.addf %207, %45 : vector<2x256xf32>
    %209 = vector.extract_strided_slice %208 {offsets = [0, 0], sizes = [2, 192], strides = [1, 1]} : vector<2x256xf32> to vector<2x192xf32>
    %210 = arith.negf %209 : vector<2x192xf32>
    %211 = math.exp %210 : vector<2x192xf32>
    %cst_39 = arith.constant 1.000000e+00 : f32
    %212 = vector.broadcast %cst_39 : f32 to vector<2x192xf32>
    %213 = arith.addf %212, %211 : vector<2x192xf32>
    %214 = arith.divf %212, %213 : vector<2x192xf32>
    %215 = vector.extract_strided_slice %208 {offsets = [0, 192], sizes = [2, 64], strides = [1, 1]} : vector<2x256xf32> to vector<2x64xf32>
    %216 = math.tanh %215 : vector<2x64xf32>
    %217 = vector.extract_strided_slice %214 {offsets = [0, 64], sizes = [2, 64], strides = [1, 1]} : vector<2x192xf32> to vector<2x64xf32>
    %218 = arith.mulf %217, %182 : vector<2x64xf32>
    %219 = vector.extract_strided_slice %214 {offsets = [0, 0], sizes = [2, 64], strides = [1, 1]} : vector<2x192xf32> to vector<2x64xf32>
    %220 = arith.mulf %219, %216 : vector<2x64xf32>
    %221 = arith.addf %218, %220 : vector<2x64xf32>
    %222 = vector.extract_strided_slice %214 {offsets = [0, 128], sizes = [2, 64], strides = [1, 1]} : vector<2x192xf32> to vector<2x64xf32>
    %223 = math.tanh %221 : vector<2x64xf32>
    %224 = arith.mulf %222, %223 : vector<2x64xf32>
    %225 = arith.truncf %204 : vector<2x64xf32> to vector<2x64xbf16>
    %cst_40 = arith.constant dense<0.000000e+00> : vector<2x256xf32>
    %226 = tpu.matmul %225, %41, %cst_40 {dimension_numbers = #tpu.dot_dimension_numbers<[1], [0], [0], [1], [0, 0, 1, 1], [], []>} : vector<2x64xbf16>, vector<64x256xbf16>, vector<2x256xf32> -> vector<2x256xf32>
    %227 = arith.addf %34, %226 : vector<2x256xf32>
    %228 = vector.extract_strided_slice %227 {offsets = [0, 0], sizes = [2, 192], strides = [1, 1]} : vector<2x256xf32> to vector<2x192xf32>
    %229 = arith.negf %228 : vector<2x192xf32>
    %230 = math.exp %229 : vector<2x192xf32>
    %cst_41 = arith.constant 1.000000e+00 : f32
    %231 = vector.broadcast %cst_41 : f32 to vector<2x192xf32>
    %232 = arith.addf %231, %230 : vector<2x192xf32>
    %233 = arith.divf %231, %232 : vector<2x192xf32>
    %234 = vector.extract_strided_slice %227 {offsets = [0, 192], sizes = [2, 64], strides = [1, 1]} : vector<2x256xf32> to vector<2x64xf32>
    %235 = math.tanh %234 : vector<2x64xf32>
    %236 = vector.extract_strided_slice %233 {offsets = [0, 64], sizes = [2, 64], strides = [1, 1]} : vector<2x192xf32> to vector<2x64xf32>
    %237 = arith.mulf %236, %201 : vector<2x64xf32>
    %238 = vector.extract_strided_slice %233 {offsets = [0, 0], sizes = [2, 64], strides = [1, 1]} : vector<2x192xf32> to vector<2x64xf32>
    %239 = arith.mulf %238, %235 : vector<2x64xf32>
    %240 = arith.addf %237, %239 : vector<2x64xf32>
    %241 = vector.extract_strided_slice %233 {offsets = [0, 128], sizes = [2, 64], strides = [1, 1]} : vector<2x192xf32> to vector<2x64xf32>
    %242 = math.tanh %240 : vector<2x64xf32>
    %243 = arith.mulf %241, %242 : vector<2x64xf32>
    %244 = tpu.concatenate %204, %224 in 1 : vector<2x64xf32>, vector<2x64xf32> -> vector<2x128xf32>
    %245 = arith.truncf %244 : vector<2x128xf32> to vector<2x128xbf16>
    %cst_42 = arith.constant dense<0.000000e+00> : vector<2x256xf32>
    %246 = tpu.matmul %245, %42, %cst_42 {dimension_numbers = #tpu.dot_dimension_numbers<[1], [0], [0], [1], [0, 0, 1, 1], [], []>} : vector<2x128xbf16>, vector<128x256xbf16>, vector<2x256xf32> -> vector<2x256xf32>
    %247 = arith.addf %246, %45 : vector<2x256xf32>
    %248 = vector.extract_strided_slice %247 {offsets = [0, 0], sizes = [2, 192], strides = [1, 1]} : vector<2x256xf32> to vector<2x192xf32>
    %249 = arith.negf %248 : vector<2x192xf32>
    %250 = math.exp %249 : vector<2x192xf32>
    %cst_43 = arith.constant 1.000000e+00 : f32
    %251 = vector.broadcast %cst_43 : f32 to vector<2x192xf32>
    %252 = arith.addf %251, %250 : vector<2x192xf32>
    %253 = arith.divf %251, %252 : vector<2x192xf32>
    %254 = vector.extract_strided_slice %247 {offsets = [0, 192], sizes = [2, 64], strides = [1, 1]} : vector<2x256xf32> to vector<2x64xf32>
    %255 = math.tanh %254 : vector<2x64xf32>
    %256 = vector.extract_strided_slice %253 {offsets = [0, 64], sizes = [2, 64], strides = [1, 1]} : vector<2x192xf32> to vector<2x64xf32>
    %257 = arith.mulf %256, %221 : vector<2x64xf32>
    %258 = vector.extract_strided_slice %253 {offsets = [0, 0], sizes = [2, 64], strides = [1, 1]} : vector<2x192xf32> to vector<2x64xf32>
    %259 = arith.mulf %258, %255 : vector<2x64xf32>
    %260 = arith.addf %257, %259 : vector<2x64xf32>
    %261 = vector.extract_strided_slice %253 {offsets = [0, 128], sizes = [2, 64], strides = [1, 1]} : vector<2x192xf32> to vector<2x64xf32>
    %262 = math.tanh %260 : vector<2x64xf32>
    %263 = arith.mulf %261, %262 : vector<2x64xf32>
    %264 = arith.truncf %243 : vector<2x64xf32> to vector<2x64xbf16>
    %cst_44 = arith.constant dense<0.000000e+00> : vector<2x256xf32>
    %265 = tpu.matmul %264, %41, %cst_44 {dimension_numbers = #tpu.dot_dimension_numbers<[1], [0], [0], [1], [0, 0, 1, 1], [], []>} : vector<2x64xbf16>, vector<64x256xbf16>, vector<2x256xf32> -> vector<2x256xf32>
    %266 = arith.addf %37, %265 : vector<2x256xf32>
    %267 = vector.extract_strided_slice %266 {offsets = [0, 0], sizes = [2, 192], strides = [1, 1]} : vector<2x256xf32> to vector<2x192xf32>
    %268 = arith.negf %267 : vector<2x192xf32>
    %269 = math.exp %268 : vector<2x192xf32>
    %cst_45 = arith.constant 1.000000e+00 : f32
    %270 = vector.broadcast %cst_45 : f32 to vector<2x192xf32>
    %271 = arith.addf %270, %269 : vector<2x192xf32>
    %272 = arith.divf %270, %271 : vector<2x192xf32>
    %273 = vector.extract_strided_slice %266 {offsets = [0, 192], sizes = [2, 64], strides = [1, 1]} : vector<2x256xf32> to vector<2x64xf32>
    %274 = math.tanh %273 : vector<2x64xf32>
    %275 = vector.extract_strided_slice %272 {offsets = [0, 64], sizes = [2, 64], strides = [1, 1]} : vector<2x192xf32> to vector<2x64xf32>
    %276 = arith.mulf %275, %240 : vector<2x64xf32>
    %277 = vector.extract_strided_slice %272 {offsets = [0, 0], sizes = [2, 64], strides = [1, 1]} : vector<2x192xf32> to vector<2x64xf32>
    %278 = arith.mulf %277, %274 : vector<2x64xf32>
    %279 = arith.addf %276, %278 : vector<2x64xf32>
    %280 = vector.extract_strided_slice %272 {offsets = [0, 128], sizes = [2, 64], strides = [1, 1]} : vector<2x192xf32> to vector<2x64xf32>
    %281 = math.tanh %279 : vector<2x64xf32>
    %282 = arith.mulf %280, %281 : vector<2x64xf32>
    %283 = tpu.concatenate %243, %263 in 1 : vector<2x64xf32>, vector<2x64xf32> -> vector<2x128xf32>
    %284 = arith.truncf %283 : vector<2x128xf32> to vector<2x128xbf16>
    %cst_46 = arith.constant dense<0.000000e+00> : vector<2x256xf32>
    %285 = tpu.matmul %284, %42, %cst_46 {dimension_numbers = #tpu.dot_dimension_numbers<[1], [0], [0], [1], [0, 0, 1, 1], [], []>} : vector<2x128xbf16>, vector<128x256xbf16>, vector<2x256xf32> -> vector<2x256xf32>
    %286 = arith.addf %285, %45 : vector<2x256xf32>
    %287 = vector.extract_strided_slice %286 {offsets = [0, 0], sizes = [2, 192], strides = [1, 1]} : vector<2x256xf32> to vector<2x192xf32>
    %288 = arith.negf %287 : vector<2x192xf32>
    %289 = math.exp %288 : vector<2x192xf32>
    %cst_47 = arith.constant 1.000000e+00 : f32
    %290 = vector.broadcast %cst_47 : f32 to vector<2x192xf32>
    %291 = arith.addf %290, %289 : vector<2x192xf32>
    %292 = arith.divf %290, %291 : vector<2x192xf32>
    %293 = vector.extract_strided_slice %286 {offsets = [0, 192], sizes = [2, 64], strides = [1, 1]} : vector<2x256xf32> to vector<2x64xf32>
    %294 = math.tanh %293 : vector<2x64xf32>
    %295 = vector.extract_strided_slice %292 {offsets = [0, 64], sizes = [2, 64], strides = [1, 1]} : vector<2x192xf32> to vector<2x64xf32>
    %296 = arith.mulf %295, %260 : vector<2x64xf32>
    %297 = vector.extract_strided_slice %292 {offsets = [0, 0], sizes = [2, 64], strides = [1, 1]} : vector<2x192xf32> to vector<2x64xf32>
    %298 = arith.mulf %297, %294 : vector<2x64xf32>
    %299 = arith.addf %296, %298 : vector<2x64xf32>
    %300 = vector.extract_strided_slice %292 {offsets = [0, 128], sizes = [2, 64], strides = [1, 1]} : vector<2x192xf32> to vector<2x64xf32>
    %301 = math.tanh %299 : vector<2x64xf32>
    %302 = arith.mulf %300, %301 : vector<2x64xf32>
    %303 = arith.truncf %282 : vector<2x64xf32> to vector<2x64xbf16>
    %cst_48 = arith.constant dense<0.000000e+00> : vector<2x256xf32>
    %304 = tpu.matmul %303, %41, %cst_48 {dimension_numbers = #tpu.dot_dimension_numbers<[1], [0], [0], [1], [0, 0, 1, 1], [], []>} : vector<2x64xbf16>, vector<64x256xbf16>, vector<2x256xf32> -> vector<2x256xf32>
    %305 = arith.addf %40, %304 : vector<2x256xf32>
    %306 = vector.extract_strided_slice %305 {offsets = [0, 0], sizes = [2, 192], strides = [1, 1]} : vector<2x256xf32> to vector<2x192xf32>
    %307 = arith.negf %306 : vector<2x192xf32>
    %308 = math.exp %307 : vector<2x192xf32>
    %cst_49 = arith.constant 1.000000e+00 : f32
    %309 = vector.broadcast %cst_49 : f32 to vector<2x192xf32>
    %310 = arith.addf %309, %308 : vector<2x192xf32>
    %311 = arith.divf %309, %310 : vector<2x192xf32>
    %312 = vector.extract_strided_slice %305 {offsets = [0, 192], sizes = [2, 64], strides = [1, 1]} : vector<2x256xf32> to vector<2x64xf32>
    %313 = math.tanh %312 : vector<2x64xf32>
    %314 = vector.extract_strided_slice %311 {offsets = [0, 64], sizes = [2, 64], strides = [1, 1]} : vector<2x192xf32> to vector<2x64xf32>
    %315 = arith.mulf %314, %279 : vector<2x64xf32>
    %316 = vector.extract_strided_slice %311 {offsets = [0, 0], sizes = [2, 64], strides = [1, 1]} : vector<2x192xf32> to vector<2x64xf32>
    %317 = arith.mulf %316, %313 : vector<2x64xf32>
    %318 = arith.addf %315, %317 : vector<2x64xf32>
    %319 = vector.extract_strided_slice %311 {offsets = [0, 128], sizes = [2, 64], strides = [1, 1]} : vector<2x192xf32> to vector<2x64xf32>
    %320 = math.tanh %318 : vector<2x64xf32>
    %321 = arith.mulf %319, %320 : vector<2x64xf32>
    %322 = tpu.concatenate %282, %302 in 1 : vector<2x64xf32>, vector<2x64xf32> -> vector<2x128xf32>
    %323 = arith.truncf %322 : vector<2x128xf32> to vector<2x128xbf16>
    %cst_50 = arith.constant dense<0.000000e+00> : vector<2x256xf32>
    %324 = tpu.matmul %323, %42, %cst_50 {dimension_numbers = #tpu.dot_dimension_numbers<[1], [0], [0], [1], [0, 0, 1, 1], [], []>} : vector<2x128xbf16>, vector<128x256xbf16>, vector<2x256xf32> -> vector<2x256xf32>
    %325 = arith.addf %324, %45 : vector<2x256xf32>
    %326 = vector.extract_strided_slice %325 {offsets = [0, 0], sizes = [2, 192], strides = [1, 1]} : vector<2x256xf32> to vector<2x192xf32>
    %327 = arith.negf %326 : vector<2x192xf32>
    %328 = math.exp %327 : vector<2x192xf32>
    %cst_51 = arith.constant 1.000000e+00 : f32
    %329 = vector.broadcast %cst_51 : f32 to vector<2x192xf32>
    %330 = arith.addf %329, %328 : vector<2x192xf32>
    %331 = arith.divf %329, %330 : vector<2x192xf32>
    %332 = vector.extract_strided_slice %325 {offsets = [0, 192], sizes = [2, 64], strides = [1, 1]} : vector<2x256xf32> to vector<2x64xf32>
    %333 = math.tanh %332 : vector<2x64xf32>
    %334 = vector.extract_strided_slice %331 {offsets = [0, 64], sizes = [2, 64], strides = [1, 1]} : vector<2x192xf32> to vector<2x64xf32>
    %335 = arith.mulf %334, %299 : vector<2x64xf32>
    %336 = vector.extract_strided_slice %331 {offsets = [0, 0], sizes = [2, 64], strides = [1, 1]} : vector<2x192xf32> to vector<2x64xf32>
    %337 = arith.mulf %336, %333 : vector<2x64xf32>
    %338 = arith.addf %335, %337 : vector<2x64xf32>
    %339 = vector.extract_strided_slice %331 {offsets = [0, 128], sizes = [2, 64], strides = [1, 1]} : vector<2x192xf32> to vector<2x64xf32>
    %340 = math.tanh %338 : vector<2x64xf32>
    %341 = arith.mulf %339, %340 : vector<2x64xf32>
    %342 = tpu.concatenate %321, %341 in 1 : vector<2x64xf32>, vector<2x64xf32> -> vector<2x128xf32>
    %343 = arith.truncf %342 : vector<2x128xf32> to vector<2x128xbf16>
    %cst_52 = arith.constant dense<0.000000e+00> : vector<2x256xf32>
    %344 = tpu.matmul %343, %42, %cst_52 {dimension_numbers = #tpu.dot_dimension_numbers<[1], [0], [0], [1], [0, 0, 1, 1], [], []>} : vector<2x128xbf16>, vector<128x256xbf16>, vector<2x256xf32> -> vector<2x256xf32>
    %345 = arith.addf %344, %45 : vector<2x256xf32>
    %346 = vector.extract_strided_slice %345 {offsets = [0, 0], sizes = [2, 192], strides = [1, 1]} : vector<2x256xf32> to vector<2x192xf32>
    %347 = arith.negf %346 : vector<2x192xf32>
    %348 = math.exp %347 : vector<2x192xf32>
    %cst_53 = arith.constant 1.000000e+00 : f32
    %349 = vector.broadcast %cst_53 : f32 to vector<2x192xf32>
    %350 = arith.addf %349, %348 : vector<2x192xf32>
    %351 = arith.divf %349, %350 : vector<2x192xf32>
    %352 = vector.extract_strided_slice %345 {offsets = [0, 192], sizes = [2, 64], strides = [1, 1]} : vector<2x256xf32> to vector<2x64xf32>
    %353 = math.tanh %352 : vector<2x64xf32>
    %354 = vector.extract_strided_slice %351 {offsets = [0, 64], sizes = [2, 64], strides = [1, 1]} : vector<2x192xf32> to vector<2x64xf32>
    %355 = arith.mulf %354, %338 : vector<2x64xf32>
    %356 = vector.extract_strided_slice %351 {offsets = [0, 0], sizes = [2, 64], strides = [1, 1]} : vector<2x192xf32> to vector<2x64xf32>
    %357 = arith.mulf %356, %353 : vector<2x64xf32>
    %358 = arith.addf %355, %357 : vector<2x64xf32>
    %359 = vector.extract_strided_slice %351 {offsets = [0, 128], sizes = [2, 64], strides = [1, 1]} : vector<2x192xf32> to vector<2x64xf32>
    %360 = math.tanh %358 : vector<2x64xf32>
    %361 = arith.mulf %359, %360 : vector<2x64xf32>
    %362 = tpu.concatenate %107, %146, %185, %224, %263, %302, %341, %361 in 0 : vector<2x64xf32>, vector<2x64xf32>, vector<2x64xf32>, vector<2x64xf32>, vector<2x64xf32>, vector<2x64xf32>, vector<2x64xf32>, vector<2x64xf32> -> vector<16x64xf32>
    %363 = arith.truncf %362 : vector<16x64xf32> to vector<16x64xbf16>
    %c0_54 = arith.constant 0 : index
    %c0_55 = arith.constant 0 : index
    %364 = vector.load %arg8[%c0_54, %c0_55] : memref<64x32xbf16, #tpu.memory_space<vmem>>, vector<64x32xbf16>
    %cst_56 = arith.constant dense<0.000000e+00> : vector<16x32xf32>
    %365 = tpu.matmul %363, %364, %cst_56 {dimension_numbers = #tpu.dot_dimension_numbers<[1], [0], [0], [1], [0, 0, 1, 1], [], []>} : vector<16x64xbf16>, vector<64x32xbf16>, vector<16x32xf32> -> vector<16x32xf32>
    %c0_57 = arith.constant 0 : index
    %c0_58 = arith.constant 0 : index
    %366 = vector.load %arg9[%c0_57, %c0_58] : memref<1x32xf32, #tpu.memory_space<vmem>>, vector<1x32xf32>
    %367 = vector.broadcast %366 : vector<1x32xf32> to vector<16x32xf32>
    %368 = arith.addf %365, %367 : vector<16x32xf32>
    %c0_59 = arith.constant 0 : index
    %c0_60 = arith.constant 0 : index
    %369 = vector.load %arg10[%c0_59, %c0_60] : memref<16x32xf32, #tpu.memory_space<vmem>>, vector<16x32xf32>
    tpu.vector_store %arg10[%c0_59, %c0_60], %368 {strides = array<i32>} : memref<16x32xf32, #tpu.memory_space<vmem>>, vector<16x32xf32>,
    return
  }
}

</mosaic_0001>

<llo_original>
// kernel: tpu_custom_call.1
$region0: #{tpu_custom_call.1}
  #allocation0 [shape = 'u32[]', space=smem, size = 0x4, offset = 0x4, fixed_abs, tag = 'smem constant byte address 0x4 - core index']
  #allocation1 [shape = 'u32[72,128]{1,0:T(1,128)}', space=vmem, size = 0x9000, scoped, tag = 'internal scratch']
  %s0 = inlined_call_operand.vmem [shape: f32[16,32], index: 0, kind: input, shape index: {}]
  %s1 = inlined_call_operand.hbm [shape: f32[16,32], index: 1, kind: input, shape index: {}]
  %s2 = inlined_call_operand.vmem [shape: bf16[32,256], index: 2, kind: input, shape index: {}]
  %s3 = inlined_call_operand.hbm [shape: bf16[32,256], index: 3, kind: input, shape index: {}]
  %s4 = inlined_call_operand.hbm [shape: bf16[64,256], index: 4, kind: input, shape index: {}]
  %s5 = inlined_call_operand.vmem [shape: f32[1,256], index: 5, kind: input, shape index: {}]
  %s6 = inlined_call_operand.hbm [shape: bf16[128,256], index: 6, kind: input, shape index: {}]
  %s7 = inlined_call_operand.vmem [shape: f32[1,256], index: 7, kind: input, shape index: {}]
  %s8 = inlined_call_operand.vmem [shape: bf16[64,32], index: 8, kind: input, shape index: {}]
  %s9 = inlined_call_operand.vmem [shape: f32[1,32], index: 9, kind: input, shape index: {}]
  %s10 = inlined_call_operand.hbm [shape: f32[16,32], index: 10, kind: output, shape index: {}]
  %s11 = sld [smem:[#allocation0]]
  $region66: #{tpu_custom_call.1} parent=0
    _
  %s13 = ssub.s32 1, %s11
  %s14 = scalar_select 0, %s13, %s11
  $region1: #{tpu_custom_call.1} parent=0
    #allocation2 [shape = 'u8[8192]{0}', space=vmem, size = 0x2000, scoped, tag = 'input window, operand 1, single buffered']
    #allocation3 [shape = 's32[1]{0}', space=sflag, size = 0x4, scoped, tag = 'scoped memory for tpu_custom_call.1']
    #allocation4 [shape = 's32[1]{0}', space=sflag, size = 0x4, scoped, tag = 'scoped memory for tpu_custom_call.1']
    #allocation5 [shape = 'u8[16384]{0}', space=vmem, size = 0x4000, scoped, tag = 'input window, operand 3, single buffered']
    #allocation6 [shape = 's32[1]{0}', space=sflag, size = 0x4, scoped, tag = 'scoped memory for tpu_custom_call.1']
    #allocation7 [shape = 'u8[32768]{0}', space=vmem, size = 0x8000, scoped, tag = 'input window, operand 4, single buffered']
    #allocation8 [shape = 'u8[65536]{0}', space=vmem, size = 0x10000, scoped, tag = 'input window, operand 6, single buffered']
    #allocation9 [shape = 's32[1]{0}', space=sflag, size = 0x4, scoped, tag = 'scoped memory for tpu_custom_call.1']
    #allocation10 [shape = 'u8[8192]{0}', space=vmem, size = 0x2000, scoped, tag = 'output window, operand 0, single buffered']
    %15 = vsyncpa [#allocation3], 0
    %16 = vsyncpa [#allocation6], 0
    %17 = vsyncpa [#allocation9], 0
    %18 = vsyncpa [#allocation4], 0
    // Predicated region
    $region2: #{tpu_custom_call.1} parent=1 // pred_check
      _
    $region3: #{tpu_custom_call.1} parent=1 // pred_check_branch
      %20 = sbr.rel (0) target = $region5
    $region4: #{tpu_custom_call.1} parent=1 // pred_region
      _
    $region5: #{tpu_custom_call.1} parent=1 // pred_fallthru
      _
    // Predicated region
    $region6: #{tpu_custom_call.1} parent=1 // pred_check
      _
    $region7: #{tpu_custom_call.1} parent=1 // pred_check_branch
      %22 = sbr.rel (0) target = $region9
    $region8: #{tpu_custom_call.1} parent=1 // pred_region
      %24 = vsyncadd [#allocation3], 0
      %s25 = sshll.u32 %s1, 4
      %s26 = int_to_ptr.hbm [resolvable:$true] %s25
      %s27 = sshll.u32 [#allocation2], 4
      %s28 = int_to_ptr.vmem [resolvable:$true] %s27
      %33 = dma.hbm_to_vmem [thread:$0]  %s26, 256, %s28, [#allocation3], 128, 128, 8
    $region9: #{tpu_custom_call.1} parent=1 // pred_fallthru
      _
    // Predicated region
    $region10: #{tpu_custom_call.1} parent=1 // pred_check
      _
    $region11: #{tpu_custom_call.1} parent=1 // pred_check_branch
      %35 = sbr.rel (0) target = $region13
    $region12: #{tpu_custom_call.1} parent=1 // pred_region
      _
    $region13: #{tpu_custom_call.1} parent=1 // pred_fallthru
      _
    // Predicated region
    $region14: #{tpu_custom_call.1} parent=1 // pred_check
      _
    $region15: #{tpu_custom_call.1} parent=1 // pred_check_branch
      %37 = sbr.rel (0) target = $region17
    $region16: #{tpu_custom_call.1} parent=1 // pred_region
      %39 = vsyncadd [#allocation6], 0
      %s40 = sshll.u32 %s3, 4
      %s41 = int_to_ptr.hbm [resolvable:$true] %s40
      %s42 = sshll.u32 [#allocation5], 4
      %s43 = int_to_ptr.vmem [resolvable:$true] %s42
      %48 = dma.hbm_to_vmem [thread:$0]  %s41, 512, %s43, [#allocation6], 128, 128, 8
    $region17: #{tpu_custom_call.1} parent=1 // pred_fallthru
      _
    // Predicated region
    $region18: #{tpu_custom_call.1} parent=1 // pred_check
      _
    $region19: #{tpu_custom_call.1} parent=1 // pred_check_branch
      %50 = sbr.rel (0) target = $region21
    $region20: #{tpu_custom_call.1} parent=1 // pred_region
      %52 = vsyncadd [#allocation6], 0
      %s53 = sshll.u32 %s4, 4
      %s54 = int_to_ptr.hbm [resolvable:$true] %s53
      %s55 = sshll.u32 [#allocation7], 4
      %s56 = int_to_ptr.vmem [resolvable:$true] %s55
      %61 = dma.hbm_to_vmem [thread:$0]  %s54, 1024, %s56, [#allocation6], 128, 128, 8
    $region21: #{tpu_custom_call.1} parent=1 // pred_fallthru
      _
    // Predicated region
    $region22: #{tpu_custom_call.1} parent=1 // pred_check
      _
    $region23: #{tpu_custom_call.1} parent=1 // pred_check_branch
      %63 = sbr.rel (0) target = $region25
    $region24: #{tpu_custom_call.1} parent=1 // pred_region
      _
    $region25: #{tpu_custom_call.1} parent=1 // pred_fallthru
      _
    // Predicated region
    $region26: #{tpu_custom_call.1} parent=1 // pred_check
      _
    $region27: #{tpu_custom_call.1} parent=1 // pred_check_branch
      %65 = sbr.rel (0) target = $region29
    $region28: #{tpu_custom_call.1} parent=1 // pred_region
      %67 = vsyncadd [#allocation9], 0
      %s68 = sshll.u32 %s6, 4
      %s69 = int_to_ptr.hbm [resolvable:$true] %s68
      %s70 = sshll.u32 [#allocation8], 4
      %s71 = int_to_ptr.vmem [resolvable:$true] %s70
      %76 = dma.hbm_to_vmem [thread:$0]  %s69, 2048, %s71, [#allocation9], 128, 128, 8
    $region29: #{tpu_custom_call.1} parent=1 // pred_fallthru
      _
    // Predicated region
    $region30: #{tpu_custom_call.1} parent=1 // pred_check
      _
    $region31: #{tpu_custom_call.1} parent=1 // pred_check_branch
      %78 = sbr.rel (0) target = $region33
    $region32: #{tpu_custom_call.1} parent=1 // pred_region
      _
    $region33: #{tpu_custom_call.1} parent=1 // pred_fallthru
      _
    // Predicated region
    $region34: #{tpu_custom_call.1} parent=1 // pred_check
      _
    $region35: #{tpu_custom_call.1} parent=1 // pred_check_branch
      %80 = sbr.rel (0) target = $region37
    $region36: #{tpu_custom_call.1} parent=1 // pred_region
      _
    $region37: #{tpu_custom_call.1} parent=1 // pred_fallthru
      _
    // Predicated region
    $region38: #{tpu_custom_call.1} parent=1 // pred_check
      _
    $region39: #{tpu_custom_call.1} parent=1 // pred_check_branch
      %82 = sbr.rel (0) target = $region41
    $region40: #{tpu_custom_call.1} parent=1 // pred_region
      _
    $region41: #{tpu_custom_call.1} parent=1 // pred_fallthru
      _
    // Predicated region
    $region42: #{tpu_custom_call.1} parent=1 // pred_check
      _
    $region43: #{tpu_custom_call.1} parent=1 // pred_check_branch
      %84 = sbr.rel (0) target = $region45
    $region44: #{tpu_custom_call.1} parent=1 // pred_region
      %86 = dma.done [#allocation3], 256
    $region45: #{tpu_custom_call.1} parent=1 // pred_fallthru
      _
    // Predicated region
    $region46: #{tpu_custom_call.1} parent=1 // pred_check
      _
    $region47: #{tpu_custom_call.1} parent=1 // pred_check_branch
      %88 = sbr.rel (0) target = $region49
    $region48: #{tpu_custom_call.1} parent=1 // pred_region
      %90 = dma.done [#allocation6], 512
    $region49: #{tpu_custom_call.1} parent=1 // pred_fallthru
      _
    // Predicated region
    $region50: #{tpu_custom_call.1} parent=1 // pred_check
      _
    $region51: #{tpu_custom_call.1} parent=1 // pred_check_branch
      %92 = sbr.rel (0) target = $region53
    $region52: #{tpu_custom_call.1} parent=1 // pred_region
      %94 = dma.done [#allocation6], 1024
    $region53: #{tpu_custom_call.1} parent=1 // pred_fallthru
      _
    // Predicated region
    $region54: #{tpu_custom_call.1} parent=1 // pred_check
      _
    $region55: #{tpu_custom_call.1} parent=1 // pred_check_branch
      %96 = sbr.rel (0) target = $region57
    $region56: #{tpu_custom_call.1} parent=1 // pred_region
      %98 = dma.done [#allocation9], 2048
    $region57: #{tpu_custom_call.1} parent=1 // pred_fallthru
      _
    %v100 = vld [vmem:[%s0] sm:$0xff]
    %v101 = vld [vmem:[%s0 + $0x8] sm:$0xff]
    %v102 = vpack.c.bf16 %v101, %v100
    %v103 = vld [vmem:[#allocation2] sm:$0xff]
    %v104 = vld [vmem:[#allocation2 + $0x8] sm:$0xff]
    %v105 = vpack.c.bf16 %v104, %v103
    %v106 = vld [vmem:[%s2] sm:$0xff]
    %v107 = vld [vmem:[%s2 + $0x8] sm:$0xff]
    %v108 = vld [vmem:[%s2 + $0x10] sm:$0xff]
    %v109 = vld [vmem:[%s2 + $0x18] sm:$0xff]
    %v110 = vld [vmem:[#allocation5] sm:$0xff]
    %v111 = vld [vmem:[#allocation5 + $0x8] sm:$0xff]
    %v112 = vld [vmem:[#allocation5 + $0x10] sm:$0xff]
    %v113 = vld [vmem:[#allocation5 + $0x18] sm:$0xff]
    %v118 = vunpack.c.l.b16 %v110
    %v119 = vunpack.c.h.b16 %v110
    %v120 = vunpack.c.l.b16 %v111
    %v121 = vunpack.c.h.b16 %v111
    %v122 = vunpack.c.l.b16 %v112
    %v123 = vunpack.c.h.b16 %v112
    %v124 = vunpack.c.l.b16 %v113
    %v125 = vunpack.c.h.b16 %v113
    %v126 = vpack.c.b16 %v120, %v118
    %v127 = vpack.c.b16 %v121, %v119
    %v128 = vpack.c.b16 %v124, %v122
    %v129 = vpack.c.b16 %v125, %v123
    %vm134 = vcmask 261120
    %v136 = vsel %vm134, %v105, 0
    %138 = vmatpush.bf16.msra.mxu0 0
    %139 = vmatpush.bf16.msra.mxu0 0
    %140 = vmatpush.bf16.msra.mxu0 0
    %141 = vmatpush.bf16.msra.mxu0 0
    %142 = vmatpush.bf16.msra.mxu0 0
    %143 = vmatpush.bf16.msra.mxu0 0
    %144 = vmatpush.bf16.msra.mxu0 %v128
    %145 = vmatpush.bf16.msra.mxu0 %v126
    %146 = vmatmul.bf16.gmra.mxu0 %v136
    %v147 = vpop.f32.mrf.mxu0
    %v148 = vadd.f32 0.0, %v147
    %v149 = vpop.f32.mrf.mxu0
    %v150 = vadd.f32 0.0, %v149
    %151 = vdwg.mxu0
    %152 = vmatpush.bf16.msra.mxu0 0
    %153 = vmatpush.bf16.msra.mxu0 0
    %154 = vmatpush.bf16.msra.mxu0 0
    %155 = vmatpush.bf16.msra.mxu0 0
    %156 = vmatpush.bf16.msra.mxu0 0
    %157 = vmatpush.bf16.msra.mxu0 0
    %158 = vmatpush.bf16.msra.mxu0 %v129
    %159 = vmatpush.bf16.msra.mxu0 %v127
    %160 = vmatmul.bf16.gmra.mxu0 %v136
    %v161 = vpop.f32.mrf.mxu0
    %v162 = vadd.f32 0.0, %v161
    %v163 = vpop.f32.mrf.mxu0
    %v164 = vadd.f32 0.0, %v163
    %165 = vdwg.mxu0
    %v168 = vrot.slane %v148, 1
    %v169 = vrot.slane %v162, 1
    %v174 = vrot.slane %v150, 1
    %v175 = vrot.slane %v164, 1
    %vm178 = vcmask 1046528
    %v179 = vsel %vm178, %v168, 0.0
    %v180 = vsel %vm178, %v169, 0.0
    %v181 = vsel %vm178, %v174, 0.0
    %v182 = vsel %vm178, %v175, 0.0
    %v187 = vunpack.c.l.b16 %v106
    %v188 = vunpack.c.h.b16 %v106
    %v189 = vunpack.c.l.b16 %v107
    %v190 = vunpack.c.h.b16 %v107
    %v191 = vunpack.c.l.b16 %v108
    %v192 = vunpack.c.h.b16 %v108
    %v193 = vunpack.c.l.b16 %v109
    %v194 = vunpack.c.h.b16 %v109
    %v195 = vpack.c.b16 %v189, %v187
    %v196 = vpack.c.b16 %v190, %v188
    %v197 = vpack.c.b16 %v193, %v191
    %v198 = vpack.c.b16 %v194, %v192
    %v204 = vsel %vm134, %v102, 0
    %206 = vmatpush.bf16.msra.mxu0 0
    %207 = vmatpush.bf16.msra.mxu0 0
    %208 = vmatpush.bf16.msra.mxu0 0
    %209 = vmatpush.bf16.msra.mxu0 0
    %210 = vmatpush.bf16.msra.mxu0 0
    %211 = vmatpush.bf16.msra.mxu0 0
    %212 = vmatpush.bf16.msra.mxu0 %v197
    %213 = vmatpush.bf16.msra.mxu0 %v195
    %214 = vmatmul.bf16.gmra.mxu0 %v204
    %v215 = vpop.f32.mrf.mxu0
    %v216 = vadd.f32 %v179, %v215
    %v217 = vpop.f32.mrf.mxu0
    %v218 = vadd.f32 %v181, %v217
    %219 = vdwg.mxu0
    %220 = vmatpush.bf16.msra.mxu0 0
    %221 = vmatpush.bf16.msra.mxu0 0
    %222 = vmatpush.bf16.msra.mxu0 0
    %223 = vmatpush.bf16.msra.mxu0 0
    %224 = vmatpush.bf16.msra.mxu0 0
    %225 = vmatpush.bf16.msra.mxu0 0
    %226 = vmatpush.bf16.msra.mxu0 %v198
    %227 = vmatpush.bf16.msra.mxu0 %v196
    %228 = vmatmul.bf16.gmra.mxu0 %v204
    %v229 = vpop.f32.mrf.mxu0
    %v230 = vadd.f32 %v180, %v229
    %v231 = vpop.f32.mrf.mxu0
    %v232 = vadd.f32 %v182, %v231
    %233 = vdwg.mxu0
    %v234 = vld [vmem:[%s5] sm:$0x3]
    %v236 = vperm.slane %v234, 0
    %v237 = vperm.slane %v234, 1
    %v240 = vadd.f32 %v216, %v236
    %v241 = vadd.f32 %v230, %v237
    %v242 = vadd.f32 %v218, %v236
    %v243 = vadd.f32 %v232, %v237
    %v246 = vrot.slane %v242, 7
    %v247 = vrot.slane %v243, 7
    %vm250 = vcmask 1040384
    %v251 = vsel %vm250, %v240, %v246
    %v252 = vsel %vm250, %v241, %v247
    %v255 = vrot.slane %v240, 1
    %v256 = vrot.slane %v241, 1
    %v259 = vsel %vm250, %v255, %v242
    %v260 = vsel %vm250, %v256, %v243
    %v261 = vrot.slane %v240, 2
    %v262 = vrot.slane %v241, 2
    %v265 = vrot.slane %v242, 1
    %v266 = vrot.slane %v243, 1
    %v269 = vsel %vm250, %v261, %v265
    %v270 = vsel %vm250, %v262, %v266
    %v271 = vrot.slane %v240, 3
    %v272 = vrot.slane %v241, 3
    %v275 = vrot.slane %v242, 2
    %v276 = vrot.slane %v243, 2
    %v279 = vsel %vm250, %v271, %v275
    %v280 = vsel %vm250, %v272, %v276
    %v281 = vrot.slane %v240, 4
    %v282 = vrot.slane %v241, 4
    %v285 = vrot.slane %v242, 3
    %v286 = vrot.slane %v243, 3
    %v289 = vsel %vm250, %v281, %v285
    %v290 = vsel %vm250, %v282, %v286
    %v291 = vrot.slane %v240, 5
    %v292 = vrot.slane %v241, 5
    %v295 = vrot.slane %v242, 4
    %v296 = vrot.slane %v243, 4
    %v299 = vsel %vm250, %v291, %v295
    %v300 = vsel %vm250, %v292, %v296
    %v301 = vrot.slane %v240, 6
    %v302 = vrot.slane %v241, 6
    %v305 = vrot.slane %v242, 5
    %v306 = vrot.slane %v243, 5
    %v309 = vsel %vm250, %v301, %v305
    %v310 = vsel %vm250, %v302, %v306
    %v311 = vrot.slane %v240, 7
    %v312 = vrot.slane %v241, 7
    %v315 = vrot.slane %v242, 6
    %v316 = vrot.slane %v243, 6
    %v319 = vsel %vm250, %v311, %v315
    %v320 = vsel %vm250, %v312, %v316
    %v321 = vld [vmem:[#allocation7] sm:$0xff]
    %v322 = vld [vmem:[#allocation7 + $0x8] sm:$0xff]
    %v323 = vld [vmem:[#allocation7 + $0x10] sm:$0xff]
    %v324 = vld [vmem:[#allocation7 + $0x18] sm:$0xff]
    %v325 = vld [vmem:[#allocation7 + $0x20] sm:$0xff]
    %v326 = vld [vmem:[#allocation7 + $0x28] sm:$0xff]
    %v327 = vld [vmem:[#allocation7 + $0x30] sm:$0xff]
    %v328 = vld [vmem:[#allocation7 + $0x38] sm:$0xff]
    %v329 = vld [vmem:[#allocation8] sm:$0xff]
    %v330 = vld [vmem:[#allocation8 + $0x8] sm:$0xff]
    %v331 = vld [vmem:[#allocation8 + $0x10] sm:$0xff]
    %v332 = vld [vmem:[#allocation8 + $0x18] sm:$0xff]
    %v333 = vld [vmem:[#allocation8 + $0x20] sm:$0xff]
    %v334 = vld [vmem:[#allocation8 + $0x28] sm:$0xff]
    %v335 = vld [vmem:[#allocation8 + $0x30] sm:$0xff]
    %v336 = vld [vmem:[#allocation8 + $0x38] sm:$0xff]
    %v337 = vld [vmem:[#allocation8 + $0x40] sm:$0xff]
    %v338 = vld [vmem:[#allocation8 + $0x48] sm:$0xff]
    %v339 = vld [vmem:[#allocation8 + $0x50] sm:$0xff]
    %v340 = vld [vmem:[#allocation8 + $0x58] sm:$0xff]
    %v341 = vld [vmem:[#allocation8 + $0x60] sm:$0xff]
    %v342 = vld [vmem:[#allocation8 + $0x68] sm:$0xff]
    %v343 = vld [vmem:[#allocation8 + $0x70] sm:$0xff]
    %v344 = vld [vmem:[#allocation8 + $0x78] sm:$0xff]
    %v345 = vld [vmem:[%s7] sm:$0x3]
    %v347 = vperm.slane %v345, 0
    %v348 = vperm.slane %v345, 1
    %v359 = vunpack.c.l.b16 %v321
    %v360 = vunpack.c.h.b16 %v321
    %v361 = vunpack.c.l.b16 %v322
    %v362 = vunpack.c.h.b16 %v322
    %v363 = vunpack.c.l.b16 %v323
    %v364 = vunpack.c.h.b16 %v323
    %v365 = vunpack.c.l.b16 %v324
    %v366 = vunpack.c.h.b16 %v324
    %v367 = vunpack.c.l.b16 %v325
    %v368 = vunpack.c.h.b16 %v325
    %v369 = vunpack.c.l.b16 %v326
    %v370 = vunpack.c.h.b16 %v326
    %v371 = vunpack.c.l.b16 %v327
    %v372 = vunpack.c.h.b16 %v327
    %v373 = vunpack.c.l.b16 %v328
    %v374 = vunpack.c.h.b16 %v328
    %v375 = vpack.c.b16 %v361, %v359
    %v376 = vpack.c.b16 %v362, %v360
    %v377 = vpack.c.b16 %v365, %v363
    %v378 = vpack.c.b16 %v366, %v364
    %v379 = vpack.c.b16 %v369, %v367
    %v380 = vpack.c.b16 %v370, %v368
    %v381 = vpack.c.b16 %v373, %v371
    %v382 = vpack.c.b16 %v374, %v372
    %vm391 = vcmask 523264
    %v393 = vsel %vm391, 0, 0
    %395 = vmatpush.bf16.msra.mxu0 0
    %396 = vmatpush.bf16.msra.mxu0 0
    %397 = vmatpush.bf16.msra.mxu0 0
    %398 = vmatpush.bf16.msra.mxu0 0
    %399 = vmatpush.bf16.msra.mxu0 %v381
    %400 = vmatpush.bf16.msra.mxu0 %v379
    %401 = vmatpush.bf16.msra.mxu0 %v377
    %402 = vmatpush.bf16.msra.mxu0 %v375
    %403 = vmatmul.bf16.gmra.mxu0 %v393
    %v404 = vpop.f32.mrf.mxu0
    %v405 = vadd.f32 0.0, %v404
    %v406 = vpop.f32.mrf.mxu0
    %407 = vdwg.mxu0
    %408 = vmatpush.bf16.msra.mxu0 0
    %409 = vmatpush.bf16.msra.mxu0 0
    %410 = vmatpush.bf16.msra.mxu0 0
    %411 = vmatpush.bf16.msra.mxu0 0
    %412 = vmatpush.bf16.msra.mxu0 %v382
    %413 = vmatpush.bf16.msra.mxu0 %v380
    %414 = vmatpush.bf16.msra.mxu0 %v378
    %415 = vmatpush.bf16.msra.mxu0 %v376
    %416 = vmatmul.bf16.gmra.mxu0 %v393
    %v417 = vpop.f32.mrf.mxu0
    %v418 = vadd.f32 0.0, %v417
    %v419 = vpop.f32.mrf.mxu0
    %420 = vdwg.mxu0
    %v421 = vadd.f32 %v251, %v405
    %v422 = vadd.f32 %v252, %v418
    %v423 = vxor.u32 %v421, 2147483648
    %v424 = vxor.u32 %v422, 2147483648
    %v425 = vmul.f32 %v423, 1.442695
    %v426 = vpow.pop %v425
    %v427 = vmul.f32 %v424, 1.442695
    %v428 = vpow.pop %v427
    %v429 = vadd.f32 %v426, 1.0
    %v430 = vadd.f32 %v428, 1.0
    %v431 = vrcp.pop %v429
    %v432 = vmul.f32 %v429, %v431
    %v433 = vsub.f32 1.0, %v432
    %v434 = vmul.f32 %v431, %v433
    %v435 = vadd.f32 %v431, %v434
    %vm436 = vweird.f32 %v429
    %vm437 = vweird.f32 %v431
    %vm438 = vmor %vm436, %vm437
    %v439 = vsel %vm438, %v431, %v435
    %v440 = vand.u32 2147483647, %v429
    %vm441 = vcmp.eq.f32.partialorder %v440, 8.507059e+37
    %v442 = vand.u32 %v429, 2147483648
    %v443 = vor.u32 1.1754944e-38, %v442
    %v444 = vsel %vm441, %v443, %v439
    %v445 = vmul.f32 1.0, %v444
    %v446 = vrcp.pop %v430
    %v447 = vmul.f32 %v430, %v446
    %v448 = vsub.f32 1.0, %v447
    %v449 = vmul.f32 %v446, %v448
    %v450 = vadd.f32 %v446, %v449
    %vm451 = vweird.f32 %v430
    %vm452 = vweird.f32 %v446
    %vm453 = vmor %vm451, %vm452
    %v454 = vsel %vm453, %v446, %v450
    %v455 = vand.u32 2147483647, %v430
    %vm456 = vcmp.eq.f32.partialorder %v455, 8.507059e+37
    %v457 = vand.u32 %v430, 2147483648
    %v458 = vor.u32 1.1754944e-38, %v457
    %v459 = vsel %vm456, %v458, %v454
    %v460 = vmul.f32 1.0, %v459
    %v461 = vtanh.pop %v422
    %v462 = vmul.f32 %v445, 0.0
    %464 = vrot.lane.b32.xlu0 %v461, 64
    %v465 = vpop.permute.xlu0 %464
    %v467 = vmul.f32 %v445, %v465
    %469 = vrot.lane.b32.xlu0 %v467, 64
    %v470 = vpop.permute.xlu0 %469
    %v472 = vadd.f32 %v462, %v470
    %v473 = vtanh.pop %v472
    %475 = vrot.lane.b32.xlu0 %v473, 64
    %v476 = vpop.permute.xlu0 %475
    %v478 = vmul.f32 %v460, %v476
    %v479 = vpack.c.bf16 %v478, %v478
    %v481 = vsel %vm391, %v479, 0
    %483 = vmatpush.bf16.msra.mxu0 0
    %484 = vmatpush.bf16.msra.mxu0 0
    %485 = vmatpush.bf16.msra.mxu0 0
    %486 = vmatpush.bf16.msra.mxu0 0
    %487 = vmatpush.bf16.msra.mxu0 %v381
    %488 = vmatpush.bf16.msra.mxu0 %v379
    %489 = vmatpush.bf16.msra.mxu0 %v377
    %490 = vmatpush.bf16.msra.mxu0 %v375
    %491 = vmatmul.bf16.gmra.mxu0 %v481
    %v492 = vpop.f32.mrf.mxu0
    %v493 = vadd.f32 0.0, %v492
    %v494 = vpop.f32.mrf.mxu0
    %495 = vdwg.mxu0
    %496 = vmatpush.bf16.msra.mxu0 0
    %497 = vmatpush.bf16.msra.mxu0 0
    %498 = vmatpush.bf16.msra.mxu0 0
    %499 = vmatpush.bf16.msra.mxu0 0
    %500 = vmatpush.bf16.msra.mxu0 %v382
    %501 = vmatpush.bf16.msra.mxu0 %v380
    %502 = vmatpush.bf16.msra.mxu0 %v378
    %503 = vmatpush.bf16.msra.mxu0 %v376
    %504 = vmatmul.bf16.gmra.mxu0 %v481
    %v505 = vpop.f32.mrf.mxu0
    %v506 = vadd.f32 0.0, %v505
    %v507 = vpop.f32.mrf.mxu0
    %508 = vdwg.mxu0
    %v509 = vadd.f32 %v259, %v493
    %v510 = vadd.f32 %v260, %v506
    %v511 = vxor.u32 %v509, 2147483648
    %v512 = vxor.u32 %v510, 2147483648
    %v513 = vmul.f32 %v511, 1.442695
    %v514 = vpow.pop %v513
    %v515 = vmul.f32 %v512, 1.442695
    %v516 = vpow.pop %v515
    %v517 = vadd.f32 %v514, 1.0
    %v518 = vadd.f32 %v516, 1.0
    %v519 = vrcp.pop %v517
    %v520 = vmul.f32 %v517, %v519
    %v521 = vsub.f32 1.0, %v520
    %v522 = vmul.f32 %v519, %v521
    %v523 = vadd.f32 %v519, %v522
    %vm524 = vweird.f32 %v517
    %vm525 = vweird.f32 %v519
    %vm526 = vmor %vm524, %vm525
    %v527 = vsel %vm526, %v519, %v523
    %v528 = vand.u32 2147483647, %v517
    %vm529 = vcmp.eq.f32.partialorder %v528, 8.507059e+37
    %v530 = vand.u32 %v517, 2147483648
    %v531 = vor.u32 1.1754944e-38, %v530
    %v532 = vsel %vm529, %v531, %v527
    %v533 = vmul.f32 1.0, %v532
    %v534 = vrcp.pop %v518
    %v535 = vmul.f32 %v518, %v534
    %v536 = vsub.f32 1.0, %v535
    %v537 = vmul.f32 %v534, %v536
    %v538 = vadd.f32 %v534, %v537
    %vm539 = vweird.f32 %v518
    %vm540 = vweird.f32 %v534
    %vm541 = vmor %vm539, %vm540
    %v542 = vsel %vm541, %v534, %v538
    %v543 = vand.u32 2147483647, %v518
    %vm544 = vcmp.eq.f32.partialorder %v543, 8.507059e+37
    %v545 = vand.u32 %v518, 2147483648
    %v546 = vor.u32 1.1754944e-38, %v545
    %v547 = vsel %vm544, %v546, %v542
    %v548 = vmul.f32 1.0, %v547
    %v549 = vtanh.pop %v510
    %v550 = vmul.f32 %v533, %v472
    %552 = vrot.lane.b32.xlu0 %v549, 64
    %v553 = vpop.permute.xlu0 %552
    %v555 = vmul.f32 %v533, %v553
    %557 = vrot.lane.b32.xlu0 %v555, 64
    %v558 = vpop.permute.xlu0 %557
    %v560 = vadd.f32 %v550, %v558
    %v561 = vtanh.pop %v560
    %563 = vrot.lane.b32.xlu0 %v561, 64
    %v564 = vpop.permute.xlu0 %563
    %v566 = vmul.f32 %v548, %v564
    %v567 = vsel %vm391, %v478, 0.0
    %v568 = vpack.c.bf16 %v567, %v567
    %v585 = vunpack.c.l.b16 %v329
    %v586 = vunpack.c.h.b16 %v329
    %v587 = vunpack.c.l.b16 %v330
    %v588 = vunpack.c.h.b16 %v330
    %v589 = vunpack.c.l.b16 %v331
    %v590 = vunpack.c.h.b16 %v331
    %v591 = vunpack.c.l.b16 %v332
    %v592 = vunpack.c.h.b16 %v332
    %v593 = vunpack.c.l.b16 %v333
    %v594 = vunpack.c.h.b16 %v333
    %v595 = vunpack.c.l.b16 %v334
    %v596 = vunpack.c.h.b16 %v334
    %v597 = vunpack.c.l.b16 %v335
    %v598 = vunpack.c.h.b16 %v335
    %v599 = vunpack.c.l.b16 %v336
    %v600 = vunpack.c.h.b16 %v336
    %v601 = vunpack.c.l.b16 %v337
    %v602 = vunpack.c.h.b16 %v337
    %v603 = vunpack.c.l.b16 %v338
    %v604 = vunpack.c.h.b16 %v338
    %v605 = vunpack.c.l.b16 %v339
    %v606 = vunpack.c.h.b16 %v339
    %v607 = vunpack.c.l.b16 %v340
    %v608 = vunpack.c.h.b16 %v340
    %v609 = vunpack.c.l.b16 %v341
    %v610 = vunpack.c.h.b16 %v341
    %v611 = vunpack.c.l.b16 %v342
    %v612 = vunpack.c.h.b16 %v342
    %v613 = vunpack.c.l.b16 %v343
    %v614 = vunpack.c.h.b16 %v343
    %v615 = vunpack.c.l.b16 %v344
    %v616 = vunpack.c.h.b16 %v344
    %v617 = vpack.c.b16 %v587, %v585
    %v618 = vpack.c.b16 %v588, %v586
    %v619 = vpack.c.b16 %v591, %v589
    %v620 = vpack.c.b16 %v592, %v590
    %v621 = vpack.c.b16 %v595, %v593
    %v622 = vpack.c.b16 %v596, %v594
    %v623 = vpack.c.b16 %v599, %v597
    %v624 = vpack.c.b16 %v600, %v598
    %v625 = vpack.c.b16 %v603, %v601
    %v626 = vpack.c.b16 %v604, %v602
    %v627 = vpack.c.b16 %v607, %v605
    %v628 = vpack.c.b16 %v608, %v606
    %v629 = vpack.c.b16 %v611, %v609
    %v630 = vpack.c.b16 %v612, %v610
    %v631 = vpack.c.b16 %v615, %v613
    %v632 = vpack.c.b16 %v616, %v614
    %649 = vmatpush.bf16.msra.mxu0 %v631
    %650 = vmatpush.bf16.msra.mxu0 %v629
    %651 = vmatpush.bf16.msra.mxu0 %v627
    %652 = vmatpush.bf16.msra.mxu0 %v625
    %653 = vmatpush.bf16.msra.mxu0 %v623
    %654 = vmatpush.bf16.msra.mxu0 %v621
    %655 = vmatpush.bf16.msra.mxu0 %v619
    %656 = vmatpush.bf16.msra.mxu0 %v617
    %657 = vmatmul.bf16.gmra.mxu0 %v568
    %v658 = vpop.f32.mrf.mxu0
    %v659 = vadd.f32 %v347, %v658
    %v660 = vpop.f32.mrf.mxu0
    %661 = vdwg.mxu0
    %662 = vmatpush.bf16.msra.mxu0 %v632
    %663 = vmatpush.bf16.msra.mxu0 %v630
    %664 = vmatpush.bf16.msra.mxu0 %v628
    %665 = vmatpush.bf16.msra.mxu0 %v626
    %666 = vmatpush.bf16.msra.mxu0 %v624
    %667 = vmatpush.bf16.msra.mxu0 %v622
    %668 = vmatpush.bf16.msra.mxu0 %v620
    %669 = vmatpush.bf16.msra.mxu0 %v618
    %670 = vmatmul.bf16.gmra.mxu0 %v568
    %v671 = vpop.f32.mrf.mxu0
    %v672 = vadd.f32 %v348, %v671
    %v673 = vpop.f32.mrf.mxu0
    %674 = vdwg.mxu0
    %v675 = vxor.u32 %v659, 2147483648
    %v676 = vxor.u32 %v672, 2147483648
    %v677 = vmul.f32 %v675, 1.442695
    %v678 = vpow.pop %v677
    %v679 = vmul.f32 %v676, 1.442695
    %v680 = vpow.pop %v679
    %v681 = vadd.f32 %v678, 1.0
    %v682 = vadd.f32 %v680, 1.0
    %v683 = vrcp.pop %v681
    %v684 = vmul.f32 %v681, %v683
    %v685 = vsub.f32 1.0, %v684
    %v686 = vmul.f32 %v683, %v685
    %v687 = vadd.f32 %v683, %v686
    %vm688 = vweird.f32 %v681
    %vm689 = vweird.f32 %v683
    %vm690 = vmor %vm688, %vm689
    %v691 = vsel %vm690, %v683, %v687
    %v692 = vand.u32 2147483647, %v681
    %vm693 = vcmp.eq.f32.partialorder %v692, 8.507059e+37
    %v694 = vand.u32 %v681, 2147483648
    %v695 = vor.u32 1.1754944e-38, %v694
    %v696 = vsel %vm693, %v695, %v691
    %v697 = vmul.f32 1.0, %v696
    %v698 = vrcp.pop %v682
    %v699 = vmul.f32 %v682, %v698
    %v700 = vsub.f32 1.0, %v699
    %v701 = vmul.f32 %v698, %v700
    %v702 = vadd.f32 %v698, %v701
    %vm703 = vweird.f32 %v682
    %vm704 = vweird.f32 %v698
    %vm705 = vmor %vm703, %vm704
    %v706 = vsel %vm705, %v698, %v702
    %v707 = vand.u32 2147483647, %v682
    %vm708 = vcmp.eq.f32.partialorder %v707, 8.507059e+37
    %v709 = vand.u32 %v682, 2147483648
    %v710 = vor.u32 1.1754944e-38, %v709
    %v711 = vsel %vm708, %v710, %v706
    %v712 = vmul.f32 1.0, %v711
    %v713 = vtanh.pop %v672
    %v714 = vmul.f32 %v697, 0.0
    %716 = vrot.lane.b32.xlu0 %v713, 64
    %v717 = vpop.permute.xlu0 %716
    %v719 = vmul.f32 %v697, %v717
    %721 = vrot.lane.b32.xlu0 %v719, 64
    %v722 = vpop.permute.xlu0 %721
    %v724 = vadd.f32 %v714, %v722
    %v725 = vtanh.pop %v724
    %727 = vrot.lane.b32.xlu0 %v725, 64
    %v728 = vpop.permute.xlu0 %727
    %v730 = vmul.f32 %v712, %v728
    %v731 = vpack.c.bf16 %v566, %v566
    %v733 = vsel %vm391, %v731, 0
    %735 = vmatpush.bf16.msra.mxu0 0
    %736 = vmatpush.bf16.msra.mxu0 0
    %737 = vmatpush.bf16.msra.mxu0 0
    %738 = vmatpush.bf16.msra.mxu0 0
    %739 = vmatpush.bf16.msra.mxu0 %v381
    %740 = vmatpush.bf16.msra.mxu0 %v379
    %741 = vmatpush.bf16.msra.mxu0 %v377
    %742 = vmatpush.bf16.msra.mxu0 %v375
    %743 = vmatmul.bf16.gmra.mxu0 %v733
    %v744 = vpop.f32.mrf.mxu0
    %v745 = vadd.f32 0.0, %v744
    %v746 = vpop.f32.mrf.mxu0
    %747 = vdwg.mxu0
    %748 = vmatpush.bf16.msra.mxu0 0
    %749 = vmatpush.bf16.msra.mxu0 0
    %750 = vmatpush.bf16.msra.mxu0 0
    %751 = vmatpush.bf16.msra.mxu0 0
    %752 = vmatpush.bf16.msra.mxu0 %v382
    %753 = vmatpush.bf16.msra.mxu0 %v380
    %754 = vmatpush.bf16.msra.mxu0 %v378
    %755 = vmatpush.bf16.msra.mxu0 %v376
    %756 = vmatmul.bf16.gmra.mxu0 %v733
    %v757 = vpop.f32.mrf.mxu0
    %v758 = vadd.f32 0.0, %v757
    %v759 = vpop.f32.mrf.mxu0
    %760 = vdwg.mxu0
    %v761 = vadd.f32 %v269, %v745
    %v762 = vadd.f32 %v270, %v758
    %v763 = vxor.u32 %v761, 2147483648
    %v764 = vxor.u32 %v762, 2147483648
    %v765 = vmul.f32 %v763, 1.442695
    %v766 = vpow.pop %v765
    %v767 = vmul.f32 %v764, 1.442695
    %v768 = vpow.pop %v767
    %v769 = vadd.f32 %v766, 1.0
    %v770 = vadd.f32 %v768, 1.0
    %v771 = vrcp.pop %v769
    %v772 = vmul.f32 %v769, %v771
    %v773 = vsub.f32 1.0, %v772
    %v774 = vmul.f32 %v771, %v773
    %v775 = vadd.f32 %v771, %v774
    %vm776 = vweird.f32 %v769
    %vm777 = vweird.f32 %v771
    %vm778 = vmor %vm776, %vm777
    %v779 = vsel %vm778, %v771, %v775
    %v780 = vand.u32 2147483647, %v769
    %vm781 = vcmp.eq.f32.partialorder %v780, 8.507059e+37
    %v782 = vand.u32 %v769, 2147483648
    %v783 = vor.u32 1.1754944e-38, %v782
    %v784 = vsel %vm781, %v783, %v779
    %v785 = vmul.f32 1.0, %v784
    %v786 = vrcp.pop %v770
    %v787 = vmul.f32 %v770, %v786
    %v788 = vsub.f32 1.0, %v787
    %v789 = vmul.f32 %v786, %v788
    %v790 = vadd.f32 %v786, %v789
    %vm791 = vweird.f32 %v770
    %vm792 = vweird.f32 %v786
    %vm793 = vmor %vm791, %vm792
    %v794 = vsel %vm793, %v786, %v790
    %v795 = vand.u32 2147483647, %v770
    %vm796 = vcmp.eq.f32.partialorder %v795, 8.507059e+37
    %v797 = vand.u32 %v770, 2147483648
    %v798 = vor.u32 1.1754944e-38, %v797
    %v799 = vsel %vm796, %v798, %v794
    %v800 = vmul.f32 1.0, %v799
    %v801 = vtanh.pop %v762
    %v802 = vmul.f32 %v785, %v560
    %804 = vrot.lane.b32.xlu0 %v801, 64
    %v805 = vpop.permute.xlu0 %804
    %v807 = vmul.f32 %v785, %v805
    %809 = vrot.lane.b32.xlu0 %v807, 64
    %v810 = vpop.permute.xlu0 %809
    %v812 = vadd.f32 %v802, %v810
    %v813 = vtanh.pop %v812
    %815 = vrot.lane.b32.xlu0 %v813, 64
    %v816 = vpop.permute.xlu0 %815
    %v818 = vmul.f32 %v800, %v816
    %820 = vrot.lane.b32.xlu0 %v730, 64
    %v821 = vpop.permute.xlu0 %820
    %v823 = vsel %vm391, %v566, %v821
    %v824 = vpack.c.bf16 %v823, %v823
    %825 = vmatpush.bf16.msra.mxu0 %v631
    %826 = vmatpush.bf16.msra.mxu0 %v629
    %827 = vmatpush.bf16.msra.mxu0 %v627
    %828 = vmatpush.bf16.msra.mxu0 %v625
    %829 = vmatpush.bf16.msra.mxu0 %v623
    %830 = vmatpush.bf16.msra.mxu0 %v621
    %831 = vmatpush.bf16.msra.mxu0 %v619
    %832 = vmatpush.bf16.msra.mxu0 %v617
    %833 = vmatmul.bf16.gmra.mxu0 %v824
    %v834 = vpop.f32.mrf.mxu0
    %v835 = vadd.f32 %v347, %v834
    %v836 = vpop.f32.mrf.mxu0
    %837 = vdwg.mxu0
    %838 = vmatpush.bf16.msra.mxu0 %v632
    %839 = vmatpush.bf16.msra.mxu0 %v630
    %840 = vmatpush.bf16.msra.mxu0 %v628
    %841 = vmatpush.bf16.msra.mxu0 %v626
    %842 = vmatpush.bf16.msra.mxu0 %v624
    %843 = vmatpush.bf16.msra.mxu0 %v622
    %844 = vmatpush.bf16.msra.mxu0 %v620
    %845 = vmatpush.bf16.msra.mxu0 %v618
    %846 = vmatmul.bf16.gmra.mxu0 %v824
    %v847 = vpop.f32.mrf.mxu0
    %v848 = vadd.f32 %v348, %v847
    %v849 = vpop.f32.mrf.mxu0
    %850 = vdwg.mxu0
    %v851 = vxor.u32 %v835, 2147483648
    %v852 = vxor.u32 %v848, 2147483648
    %v853 = vmul.f32 %v851, 1.442695
    %v854 = vpow.pop %v853
    %v855 = vmul.f32 %v852, 1.442695
    %v856 = vpow.pop %v855
    %v857 = vadd.f32 %v854, 1.0
    %v858 = vadd.f32 %v856, 1.0
    %v859 = vrcp.pop %v857
    %v860 = vmul.f32 %v857, %v859
    %v861 = vsub.f32 1.0, %v860
    %v862 = vmul.f32 %v859, %v861
    %v863 = vadd.f32 %v859, %v862
    %vm864 = vweird.f32 %v857
    %vm865 = vweird.f32 %v859
    %vm866 = vmor %vm864, %vm865
    %v867 = vsel %vm866, %v859, %v863
    %v868 = vand.u32 2147483647, %v857
    %vm869 = vcmp.eq.f32.partialorder %v868, 8.507059e+37
    %v870 = vand.u32 %v857, 2147483648
    %v871 = vor.u32 1.1754944e-38, %v870
    %v872 = vsel %vm869, %v871, %v867
    %v873 = vmul.f32 1.0, %v872
    %v874 = vrcp.pop %v858
    %v875 = vmul.f32 %v858, %v874
    %v876 = vsub.f32 1.0, %v875
    %v877 = vmul.f32 %v874, %v876
    %v878 = vadd.f32 %v874, %v877
    %vm879 = vweird.f32 %v858
    %vm880 = vweird.f32 %v874
    %vm881 = vmor %vm879, %vm880
    %v882 = vsel %vm881, %v874, %v878
    %v883 = vand.u32 2147483647, %v858
    %vm884 = vcmp.eq.f32.partialorder %v883, 8.507059e+37
    %v885 = vand.u32 %v858, 2147483648
    %v886 = vor.u32 1.1754944e-38, %v885
    %v887 = vsel %vm884, %v886, %v882
    %v888 = vmul.f32 1.0, %v887
    %v889 = vtanh.pop %v848
    %v890 = vmul.f32 %v873, %v724
    %892 = vrot.lane.b32.xlu0 %v889, 64
    %v893 = vpop.permute.xlu0 %892
    %v895 = vmul.f32 %v873, %v893
    %897 = vrot.lane.b32.xlu0 %v895, 64
    %v898 = vpop.permute.xlu0 %897
    %v900 = vadd.f32 %v890, %v898
    %v901 = vtanh.pop %v900
    %903 = vrot.lane.b32.xlu0 %v901, 64
    %v904 = vpop.permute.xlu0 %903
    %v906 = vmul.f32 %v888, %v904
    %v907 = vpack.c.bf16 %v818, %v818
    %v909 = vsel %vm391, %v907, 0
    %911 = vmatpush.bf16.msra.mxu0 0
    %912 = vmatpush.bf16.msra.mxu0 0
    %913 = vmatpush.bf16.msra.mxu0 0
    %914 = vmatpush.bf16.msra.mxu0 0
    %915 = vmatpush.bf16.msra.mxu0 %v381
    %916 = vmatpush.bf16.msra.mxu0 %v379
    %917 = vmatpush.bf16.msra.mxu0 %v377
    %918 = vmatpush.bf16.msra.mxu0 %v375
    %919 = vmatmul.bf16.gmra.mxu0 %v909
    %v920 = vpop.f32.mrf.mxu0
    %v921 = vadd.f32 0.0, %v920
    %v922 = vpop.f32.mrf.mxu0
    %923 = vdwg.mxu0
    %924 = vmatpush.bf16.msra.mxu0 0
    %925 = vmatpush.bf16.msra.mxu0 0
    %926 = vmatpush.bf16.msra.mxu0 0
    %927 = vmatpush.bf16.msra.mxu0 0
    %928 = vmatpush.bf16.msra.mxu0 %v382
    %929 = vmatpush.bf16.msra.mxu0 %v380
    %930 = vmatpush.bf16.msra.mxu0 %v378
    %931 = vmatpush.bf16.msra.mxu0 %v376
    %932 = vmatmul.bf16.gmra.mxu0 %v909
    %v933 = vpop.f32.mrf.mxu0
    %v934 = vadd.f32 0.0, %v933
    %v935 = vpop.f32.mrf.mxu0
    %936 = vdwg.mxu0
    %v937 = vadd.f32 %v279, %v921
    %v938 = vadd.f32 %v280, %v934
    %v939 = vxor.u32 %v937, 2147483648
    %v940 = vxor.u32 %v938, 2147483648
    %v941 = vmul.f32 %v939, 1.442695
    %v942 = vpow.pop %v941
    %v943 = vmul.f32 %v940, 1.442695
    %v944 = vpow.pop %v943
    %v945 = vadd.f32 %v942, 1.0
    %v946 = vadd.f32 %v944, 1.0
    %v947 = vrcp.pop %v945
    %v948 = vmul.f32 %v945, %v947
    %v949 = vsub.f32 1.0, %v948
    %v950 = vmul.f32 %v947, %v949
    %v951 = vadd.f32 %v947, %v950
    %vm952 = vweird.f32 %v945
    %vm953 = vweird.f32 %v947
    %vm954 = vmor %vm952, %vm953
    %v955 = vsel %vm954, %v947, %v951
    %v956 = vand.u32 2147483647, %v945
    %vm957 = vcmp.eq.f32.partialorder %v956, 8.507059e+37
    %v958 = vand.u32 %v945, 2147483648
    %v959 = vor.u32 1.1754944e-38, %v958
    %v960 = vsel %vm957, %v959, %v955
    %v961 = vmul.f32 1.0, %v960
    %v962 = vrcp.pop %v946
    %v963 = vmul.f32 %v946, %v962
    %v964 = vsub.f32 1.0, %v963
    %v965 = vmul.f32 %v962, %v964
    %v966 = vadd.f32 %v962, %v965
    %vm967 = vweird.f32 %v946
    %vm968 = vweird.f32 %v962
    %vm969 = vmor %vm967, %vm968
    %v970 = vsel %vm969, %v962, %v966
    %v971 = vand.u32 2147483647, %v946
    %vm972 = vcmp.eq.f32.partialorder %v971, 8.507059e+37
    %v973 = vand.u32 %v946, 2147483648
    %v974 = vor.u32 1.1754944e-38, %v973
    %v975 = vsel %vm972, %v974, %v970
    %v976 = vmul.f32 1.0, %v975
    %v977 = vtanh.pop %v938
    %v978 = vmul.f32 %v961, %v812
    %980 = vrot.lane.b32.xlu0 %v977, 64
    %v981 = vpop.permute.xlu0 %980
    %v983 = vmul.f32 %v961, %v981
    %985 = vrot.lane.b32.xlu0 %v983, 64
    %v986 = vpop.permute.xlu0 %985
    %v988 = vadd.f32 %v978, %v986
    %v989 = vtanh.pop %v988
    %991 = vrot.lane.b32.xlu0 %v989, 64
    %v992 = vpop.permute.xlu0 %991
    %v994 = vmul.f32 %v976, %v992
    %996 = vrot.lane.b32.xlu0 %v906, 64
    %v997 = vpop.permute.xlu0 %996
    %v999 = vsel %vm391, %v818, %v997
    %v1000 = vpack.c.bf16 %v999, %v999
    %1001 = vmatpush.bf16.msra.mxu0 %v631
    %1002 = vmatpush.bf16.msra.mxu0 %v629
    %1003 = vmatpush.bf16.msra.mxu0 %v627
    %1004 = vmatpush.bf16.msra.mxu0 %v625
    %1005 = vmatpush.bf16.msra.mxu0 %v623
    %1006 = vmatpush.bf16.msra.mxu0 %v621
    %1007 = vmatpush.bf16.msra.mxu0 %v619
    %1008 = vmatpush.bf16.msra.mxu0 %v617
    %1009 = vmatmul.bf16.gmra.mxu0 %v1000
    %v1010 = vpop.f32.mrf.mxu0
    %v1011 = vadd.f32 %v347, %v1010
    %v1012 = vpop.f32.mrf.mxu0
    %1013 = vdwg.mxu0
    %1014 = vmatpush.bf16.msra.mxu0 %v632
    %1015 = vmatpush.bf16.msra.mxu0 %v630
    %1016 = vmatpush.bf16.msra.mxu0 %v628
    %1017 = vmatpush.bf16.msra.mxu0 %v626
    %1018 = vmatpush.bf16.msra.mxu0 %v624
    %1019 = vmatpush.bf16.msra.mxu0 %v622
    %1020 = vmatpush.bf16.msra.mxu0 %v620
    %1021 = vmatpush.bf16.msra.mxu0 %v618
    %1022 = vmatmul.bf16.gmra.mxu0 %v1000
    %v1023 = vpop.f32.mrf.mxu0
    %v1024 = vadd.f32 %v348, %v1023
    %v1025 = vpop.f32.mrf.mxu0
    %1026 = vdwg.mxu0
    %v1027 = vxor.u32 %v1011, 2147483648
    %v1028 = vxor.u32 %v1024, 2147483648
    %v1029 = vmul.f32 %v1027, 1.442695
    %v1030 = vpow.pop %v1029
    %v1031 = vmul.f32 %v1028, 1.442695
    %v1032 = vpow.pop %v1031
    %v1033 = vadd.f32 %v1030, 1.0
    %v1034 = vadd.f32 %v1032, 1.0
    %v1035 = vrcp.pop %v1033
    %v1036 = vmul.f32 %v1033, %v1035
    %v1037 = vsub.f32 1.0, %v1036
    %v1038 = vmul.f32 %v1035, %v1037
    %v1039 = vadd.f32 %v1035, %v1038
    %vm1040 = vweird.f32 %v1033
    %vm1041 = vweird.f32 %v1035
    %vm1042 = vmor %vm1040, %vm1041
    %v1043 = vsel %vm1042, %v1035, %v1039
    %v1044 = vand.u32 2147483647, %v1033
    %vm1045 = vcmp.eq.f32.partialorder %v1044, 8.507059e+37
    %v1046 = vand.u32 %v1033, 2147483648
    %v1047 = vor.u32 1.1754944e-38, %v1046
    %v1048 = vsel %vm1045, %v1047, %v1043
    %v1049 = vmul.f32 1.0, %v1048
    %v1050 = vrcp.pop %v1034
    %v1051 = vmul.f32 %v1034, %v1050
    %v1052 = vsub.f32 1.0, %v1051
    %v1053 = vmul.f32 %v1050, %v1052
    %v1054 = vadd.f32 %v1050, %v1053
    %vm1055 = vweird.f32 %v1034
    %vm1056 = vweird.f32 %v1050
    %vm1057 = vmor %vm1055, %vm1056
    %v1058 = vsel %vm1057, %v1050, %v1054
    %v1059 = vand.u32 2147483647, %v1034
    %vm1060 = vcmp.eq.f32.partialorder %v1059, 8.507059e+37
    %v1061 = vand.u32 %v1034, 2147483648
    %v1062 = vor.u32 1.1754944e-38, %v1061
    %v1063 = vsel %vm1060, %v1062, %v1058
    %v1064 = vmul.f32 1.0, %v1063
    %v1065 = vtanh.pop %v1024
    %v1066 = vmul.f32 %v1049, %v900
    %1068 = vrot.lane.b32.xlu0 %v1065, 64
    %v1069 = vpop.permute.xlu0 %1068
    %v1071 = vmul.f32 %v1049, %v1069
    %1073 = vrot.lane.b32.xlu0 %v1071, 64
    %v1074 = vpop.permute.xlu0 %1073
    %v1076 = vadd.f32 %v1066, %v1074
    %v1077 = vtanh.pop %v1076
    %1079 = vrot.lane.b32.xlu0 %v1077, 64
    %v1080 = vpop.permute.xlu0 %1079
    %v1082 = vmul.f32 %v1064, %v1080
    %v1083 = vpack.c.bf16 %v994, %v994
    %v1085 = vsel %vm391, %v1083, 0
    %1087 = vmatpush.bf16.msra.mxu0 0
    %1088 = vmatpush.bf16.msra.mxu0 0
    %1089 = vmatpush.bf16.msra.mxu0 0
    %1090 = vmatpush.bf16.msra.mxu0 0
    %1091 = vmatpush.bf16.msra.mxu0 %v381
    %1092 = vmatpush.bf16.msra.mxu0 %v379
    %1093 = vmatpush.bf16.msra.mxu0 %v377
    %1094 = vmatpush.bf16.msra.mxu0 %v375
    %1095 = vmatmul.bf16.gmra.mxu0 %v1085
    %v1096 = vpop.f32.mrf.mxu0
    %v1097 = vadd.f32 0.0, %v1096
    %v1098 = vpop.f32.mrf.mxu0
    %1099 = vdwg.mxu0
    %1100 = vmatpush.bf16.msra.mxu0 0
    %1101 = vmatpush.bf16.msra.mxu0 0
    %1102 = vmatpush.bf16.msra.mxu0 0
    %1103 = vmatpush.bf16.msra.mxu0 0
    %1104 = vmatpush.bf16.msra.mxu0 %v382
    %1105 = vmatpush.bf16.msra.mxu0 %v380
    %1106 = vmatpush.bf16.msra.mxu0 %v378
    %1107 = vmatpush.bf16.msra.mxu0 %v376
    %1108 = vmatmul.bf16.gmra.mxu0 %v1085
    %v1109 = vpop.f32.mrf.mxu0
    %v1110 = vadd.f32 0.0, %v1109
    %v1111 = vpop.f32.mrf.mxu0
    %1112 = vdwg.mxu0
    %v1113 = vadd.f32 %v289, %v1097
    %v1114 = vadd.f32 %v290, %v1110
    %v1115 = vxor.u32 %v1113, 2147483648
    %v1116 = vxor.u32 %v1114, 2147483648
    %v1117 = vmul.f32 %v1115, 1.442695
    %v1118 = vpow.pop %v1117
    %v1119 = vmul.f32 %v1116, 1.442695
    %v1120 = vpow.pop %v1119
    %v1121 = vadd.f32 %v1118, 1.0
    %v1122 = vadd.f32 %v1120, 1.0
    %v1123 = vrcp.pop %v1121
    %v1124 = vmul.f32 %v1121, %v1123
    %v1125 = vsub.f32 1.0, %v1124
    %v1126 = vmul.f32 %v1123, %v1125
    %v1127 = vadd.f32 %v1123, %v1126
    %vm1128 = vweird.f32 %v1121
    %vm1129 = vweird.f32 %v1123
    %vm1130 = vmor %vm1128, %vm1129
    %v1131 = vsel %vm1130, %v1123, %v1127
    %v1132 = vand.u32 2147483647, %v1121
    %vm1133 = vcmp.eq.f32.partialorder %v1132, 8.507059e+37
    %v1134 = vand.u32 %v1121, 2147483648
    %v1135 = vor.u32 1.1754944e-38, %v1134
    %v1136 = vsel %vm1133, %v1135, %v1131
    %v1137 = vmul.f32 1.0, %v1136
    %v1138 = vrcp.pop %v1122
    %v1139 = vmul.f32 %v1122, %v1138
    %v1140 = vsub.f32 1.0, %v1139
    %v1141 = vmul.f32 %v1138, %v1140
    %v1142 = vadd.f32 %v1138, %v1141
    %vm1143 = vweird.f32 %v1122
    %vm1144 = vweird.f32 %v1138
    %vm1145 = vmor %vm1143, %vm1144
    %v1146 = vsel %vm1145, %v1138, %v1142
    %v1147 = vand.u32 2147483647, %v1122
    %vm1148 = vcmp.eq.f32.partialorder %v1147, 8.507059e+37
    %v1149 = vand.u32 %v1122, 2147483648
    %v1150 = vor.u32 1.1754944e-38, %v1149
    %v1151 = vsel %vm1148, %v1150, %v1146
    %v1152 = vmul.f32 1.0, %v1151
    %v1153 = vtanh.pop %v1114
    %v1154 = vmul.f32 %v1137, %v988
    %1156 = vrot.lane.b32.xlu0 %v1153, 64
    %v1157 = vpop.permute.xlu0 %1156
    %v1159 = vmul.f32 %v1137, %v1157
    %1161 = vrot.lane.b32.xlu0 %v1159, 64
    %v1162 = vpop.permute.xlu0 %1161
    %v1164 = vadd.f32 %v1154, %v1162
    %v1165 = vtanh.pop %v1164
    %1167 = vrot.lane.b32.xlu0 %v1165, 64
    %v1168 = vpop.permute.xlu0 %1167
    %v1170 = vmul.f32 %v1152, %v1168
    %1172 = vrot.lane.b32.xlu0 %v1082, 64
    %v1173 = vpop.permute.xlu0 %1172
    %v1175 = vsel %vm391, %v994, %v1173
    %v1176 = vpack.c.bf16 %v1175, %v1175
    %1177 = vmatpush.bf16.msra.mxu0 %v631
    %1178 = vmatpush.bf16.msra.mxu0 %v629
    %1179 = vmatpush.bf16.msra.mxu0 %v627
    %1180 = vmatpush.bf16.msra.mxu0 %v625
    %1181 = vmatpush.bf16.msra.mxu0 %v623
    %1182 = vmatpush.bf16.msra.mxu0 %v621
    %1183 = vmatpush.bf16.msra.mxu0 %v619
    %1184 = vmatpush.bf16.msra.mxu0 %v617
    %1185 = vmatmul.bf16.gmra.mxu0 %v1176
    %v1186 = vpop.f32.mrf.mxu0
    %v1187 = vadd.f32 %v347, %v1186
    %v1188 = vpop.f32.mrf.mxu0
    %1189 = vdwg.mxu0
    %1190 = vmatpush.bf16.msra.mxu0 %v632
    %1191 = vmatpush.bf16.msra.mxu0 %v630
    %1192 = vmatpush.bf16.msra.mxu0 %v628
    %1193 = vmatpush.bf16.msra.mxu0 %v626
    %1194 = vmatpush.bf16.msra.mxu0 %v624
    %1195 = vmatpush.bf16.msra.mxu0 %v622
    %1196 = vmatpush.bf16.msra.mxu0 %v620
    %1197 = vmatpush.bf16.msra.mxu0 %v618
    %1198 = vmatmul.bf16.gmra.mxu0 %v1176
    %v1199 = vpop.f32.mrf.mxu0
    %v1200 = vadd.f32 %v348, %v1199
    %v1201 = vpop.f32.mrf.mxu0
    %1202 = vdwg.mxu0
    %v1203 = vxor.u32 %v1187, 2147483648
    %v1204 = vxor.u32 %v1200, 2147483648
    %v1205 = vmul.f32 %v1203, 1.442695
    %v1206 = vpow.pop %v1205
    %v1207 = vmul.f32 %v1204, 1.442695
    %v1208 = vpow.pop %v1207
    %v1209 = vadd.f32 %v1206, 1.0
    %v1210 = vadd.f32 %v1208, 1.0
    %v1211 = vrcp.pop %v1209
    %v1212 = vmul.f32 %v1209, %v1211
    %v1213 = vsub.f32 1.0, %v1212
    %v1214 = vmul.f32 %v1211, %v1213
    %v1215 = vadd.f32 %v1211, %v1214
    %vm1216 = vweird.f32 %v1209
    %vm1217 = vweird.f32 %v1211
    %vm1218 = vmor %vm1216, %vm1217
    %v1219 = vsel %vm1218, %v1211, %v1215
    %v1220 = vand.u32 2147483647, %v1209
    %vm1221 = vcmp.eq.f32.partialorder %v1220, 8.507059e+37
    %v1222 = vand.u32 %v1209, 2147483648
    %v1223 = vor.u32 1.1754944e-38, %v1222
    %v1224 = vsel %vm1221, %v1223, %v1219
    %v1225 = vmul.f32 1.0, %v1224
    %v1226 = vrcp.pop %v1210
    %v1227 = vmul.f32 %v1210, %v1226
    %v1228 = vsub.f32 1.0, %v1227
    %v1229 = vmul.f32 %v1226, %v1228
    %v1230 = vadd.f32 %v1226, %v1229
    %vm1231 = vweird.f32 %v1210
    %vm1232 = vweird.f32 %v1226
    %vm1233 = vmor %vm1231, %vm1232
    %v1234 = vsel %vm1233, %v1226, %v1230
    %v1235 = vand.u32 2147483647, %v1210
    %vm1236 = vcmp.eq.f32.partialorder %v1235, 8.507059e+37
    %v1237 = vand.u32 %v1210, 2147483648
    %v1238 = vor.u32 1.1754944e-38, %v1237
    %v1239 = vsel %vm1236, %v1238, %v1234
    %v1240 = vmul.f32 1.0, %v1239
    %v1241 = vtanh.pop %v1200
    %v1242 = vmul.f32 %v1225, %v1076
    %1244 = vrot.lane.b32.xlu0 %v1241, 64
    %v1245 = vpop.permute.xlu0 %1244
    %v1247 = vmul.f32 %v1225, %v1245
    %1249 = vrot.lane.b32.xlu0 %v1247, 64
    %v1250 = vpop.permute.xlu0 %1249
    %v1252 = vadd.f32 %v1242, %v1250
    %v1253 = vtanh.pop %v1252
    %1255 = vrot.lane.b32.xlu0 %v1253, 64
    %v1256 = vpop.permute.xlu0 %1255
    %v1258 = vmul.f32 %v1240, %v1256
    %v1259 = vpack.c.bf16 %v1170, %v1170
    %v1261 = vsel %vm391, %v1259, 0
    %1263 = vmatpush.bf16.msra.mxu0 0
    %1264 = vmatpush.bf16.msra.mxu0 0
    %1265 = vmatpush.bf16.msra.mxu0 0
    %1266 = vmatpush.bf16.msra.mxu0 0
    %1267 = vmatpush.bf16.msra.mxu0 %v381
    %1268 = vmatpush.bf16.msra.mxu0 %v379
    %1269 = vmatpush.bf16.msra.mxu0 %v377
    %1270 = vmatpush.bf16.msra.mxu0 %v375
    %1271 = vmatmul.bf16.gmra.mxu0 %v1261
    %v1272 = vpop.f32.mrf.mxu0
    %v1273 = vadd.f32 0.0, %v1272
    %v1274 = vpop.f32.mrf.mxu0
    %1275 = vdwg.mxu0
    %1276 = vmatpush.bf16.msra.mxu0 0
    %1277 = vmatpush.bf16.msra.mxu0 0
    %1278 = vmatpush.bf16.msra.mxu0 0
    %1279 = vmatpush.bf16.msra.mxu0 0
    %1280 = vmatpush.bf16.msra.mxu0 %v382
    %1281 = vmatpush.bf16.msra.mxu0 %v380
    %1282 = vmatpush.bf16.msra.mxu0 %v378
    %1283 = vmatpush.bf16.msra.mxu0 %v376
    %1284 = vmatmul.bf16.gmra.mxu0 %v1261
    %v1285 = vpop.f32.mrf.mxu0
    %v1286 = vadd.f32 0.0, %v1285
    %v1287 = vpop.f32.mrf.mxu0
    %1288 = vdwg.mxu0
    %v1289 = vadd.f32 %v299, %v1273
    %v1290 = vadd.f32 %v300, %v1286
    %v1291 = vxor.u32 %v1289, 2147483648
    %v1292 = vxor.u32 %v1290, 2147483648
    %v1293 = vmul.f32 %v1291, 1.442695
    %v1294 = vpow.pop %v1293
    %v1295 = vmul.f32 %v1292, 1.442695
    %v1296 = vpow.pop %v1295
    %v1297 = vadd.f32 %v1294, 1.0
    %v1298 = vadd.f32 %v1296, 1.0
    %v1299 = vrcp.pop %v1297
    %v1300 = vmul.f32 %v1297, %v1299
    %v1301 = vsub.f32 1.0, %v1300
    %v1302 = vmul.f32 %v1299, %v1301
    %v1303 = vadd.f32 %v1299, %v1302
    %vm1304 = vweird.f32 %v1297
    %vm1305 = vweird.f32 %v1299
    %vm1306 = vmor %vm1304, %vm1305
    %v1307 = vsel %vm1306, %v1299, %v1303
    %v1308 = vand.u32 2147483647, %v1297
    %vm1309 = vcmp.eq.f32.partialorder %v1308, 8.507059e+37
    %v1310 = vand.u32 %v1297, 2147483648
    %v1311 = vor.u32 1.1754944e-38, %v1310
    %v1312 = vsel %vm1309, %v1311, %v1307
    %v1313 = vmul.f32 1.0, %v1312
    %v1314 = vrcp.pop %v1298
    %v1315 = vmul.f32 %v1298, %v1314
    %v1316 = vsub.f32 1.0, %v1315
    %v1317 = vmul.f32 %v1314, %v1316
    %v1318 = vadd.f32 %v1314, %v1317
    %vm1319 = vweird.f32 %v1298
    %vm1320 = vweird.f32 %v1314
    %vm1321 = vmor %vm1319, %vm1320
    %v1322 = vsel %vm1321, %v1314, %v1318
    %v1323 = vand.u32 2147483647, %v1298
    %vm1324 = vcmp.eq.f32.partialorder %v1323, 8.507059e+37
    %v1325 = vand.u32 %v1298, 2147483648
    %v1326 = vor.u32 1.1754944e-38, %v1325
    %v1327 = vsel %vm1324, %v1326, %v1322
    %v1328 = vmul.f32 1.0, %v1327
    %v1329 = vtanh.pop %v1290
    %v1330 = vmul.f32 %v1313, %v1164
    %1332 = vrot.lane.b32.xlu0 %v1329, 64
    %v1333 = vpop.permute.xlu0 %1332
    %v1335 = vmul.f32 %v1313, %v1333
    %1337 = vrot.lane.b32.xlu0 %v1335, 64
    %v1338 = vpop.permute.xlu0 %1337
    %v1340 = vadd.f32 %v1330, %v1338
    %v1341 = vtanh.pop %v1340
    %1343 = vrot.lane.b32.xlu0 %v1341, 64
    %v1344 = vpop.permute.xlu0 %1343
    %v1346 = vmul.f32 %v1328, %v1344
    %1348 = vrot.lane.b32.xlu0 %v1258, 64
    %v1349 = vpop.permute.xlu0 %1348
    %v1351 = vsel %vm391, %v1170, %v1349
    %v1352 = vpack.c.bf16 %v1351, %v1351
    %1353 = vmatpush.bf16.msra.mxu0 %v631
    %1354 = vmatpush.bf16.msra.mxu0 %v629
    %1355 = vmatpush.bf16.msra.mxu0 %v627
    %1356 = vmatpush.bf16.msra.mxu0 %v625
    %1357 = vmatpush.bf16.msra.mxu0 %v623
    %1358 = vmatpush.bf16.msra.mxu0 %v621
    %1359 = vmatpush.bf16.msra.mxu0 %v619
    %1360 = vmatpush.bf16.msra.mxu0 %v617
    %1361 = vmatmul.bf16.gmra.mxu0 %v1352
    %v1362 = vpop.f32.mrf.mxu0
    %v1363 = vadd.f32 %v347, %v1362
    %v1364 = vpop.f32.mrf.mxu0
    %1365 = vdwg.mxu0
    %1366 = vmatpush.bf16.msra.mxu0 %v632
    %1367 = vmatpush.bf16.msra.mxu0 %v630
    %1368 = vmatpush.bf16.msra.mxu0 %v628
    %1369 = vmatpush.bf16.msra.mxu0 %v626
    %1370 = vmatpush.bf16.msra.mxu0 %v624
    %1371 = vmatpush.bf16.msra.mxu0 %v622
    %1372 = vmatpush.bf16.msra.mxu0 %v620
    %1373 = vmatpush.bf16.msra.mxu0 %v618
    %1374 = vmatmul.bf16.gmra.mxu0 %v1352
    %v1375 = vpop.f32.mrf.mxu0
    %v1376 = vadd.f32 %v348, %v1375
    %v1377 = vpop.f32.mrf.mxu0
    %1378 = vdwg.mxu0
    %v1379 = vxor.u32 %v1363, 2147483648
    %v1380 = vxor.u32 %v1376, 2147483648
    %v1381 = vmul.f32 %v1379, 1.442695
    %v1382 = vpow.pop %v1381
    %v1383 = vmul.f32 %v1380, 1.442695
    %v1384 = vpow.pop %v1383
    %v1385 = vadd.f32 %v1382, 1.0
    %v1386 = vadd.f32 %v1384, 1.0
    %v1387 = vrcp.pop %v1385
    %v1388 = vmul.f32 %v1385, %v1387
    %v1389 = vsub.f32 1.0, %v1388
    %v1390 = vmul.f32 %v1387, %v1389
    %v1391 = vadd.f32 %v1387, %v1390
    %vm1392 = vweird.f32 %v1385
    %vm1393 = vweird.f32 %v1387
    %vm1394 = vmor %vm1392, %vm1393
    %v1395 = vsel %vm1394, %v1387, %v1391
    %v1396 = vand.u32 2147483647, %v1385
    %vm1397 = vcmp.eq.f32.partialorder %v1396, 8.507059e+37
    %v1398 = vand.u32 %v1385, 2147483648
    %v1399 = vor.u32 1.1754944e-38, %v1398
    %v1400 = vsel %vm1397, %v1399, %v1395
    %v1401 = vmul.f32 1.0, %v1400
    %v1402 = vrcp.pop %v1386
    %v1403 = vmul.f32 %v1386, %v1402
    %v1404 = vsub.f32 1.0, %v1403
    %v1405 = vmul.f32 %v1402, %v1404
    %v1406 = vadd.f32 %v1402, %v1405
    %vm1407 = vweird.f32 %v1386
    %vm1408 = vweird.f32 %v1402
    %vm1409 = vmor %vm1407, %vm1408
    %v1410 = vsel %vm1409, %v1402, %v1406
    %v1411 = vand.u32 2147483647, %v1386
    %vm1412 = vcmp.eq.f32.partialorder %v1411, 8.507059e+37
    %v1413 = vand.u32 %v1386, 2147483648
    %v1414 = vor.u32 1.1754944e-38, %v1413
    %v1415 = vsel %vm1412, %v1414, %v1410
    %v1416 = vmul.f32 1.0, %v1415
    %v1417 = vtanh.pop %v1376
    %v1418 = vmul.f32 %v1401, %v1252
    %1420 = vrot.lane.b32.xlu0 %v1417, 64
    %v1421 = vpop.permute.xlu0 %1420
    %v1423 = vmul.f32 %v1401, %v1421
    %1425 = vrot.lane.b32.xlu0 %v1423, 64
    %v1426 = vpop.permute.xlu0 %1425
    %v1428 = vadd.f32 %v1418, %v1426
    %v1429 = vtanh.pop %v1428
    %1431 = vrot.lane.b32.xlu0 %v1429, 64
    %v1432 = vpop.permute.xlu0 %1431
    %v1434 = vmul.f32 %v1416, %v1432
    %v1435 = vpack.c.bf16 %v1346, %v1346
    %v1437 = vsel %vm391, %v1435, 0
    %1439 = vmatpush.bf16.msra.mxu0 0
    %1440 = vmatpush.bf16.msra.mxu0 0
    %1441 = vmatpush.bf16.msra.mxu0 0
    %1442 = vmatpush.bf16.msra.mxu0 0
    %1443 = vmatpush.bf16.msra.mxu0 %v381
    %1444 = vmatpush.bf16.msra.mxu0 %v379
    %1445 = vmatpush.bf16.msra.mxu0 %v377
    %1446 = vmatpush.bf16.msra.mxu0 %v375
    %1447 = vmatmul.bf16.gmra.mxu0 %v1437
    %v1448 = vpop.f32.mrf.mxu0
    %v1449 = vadd.f32 0.0, %v1448
    %v1450 = vpop.f32.mrf.mxu0
    %1451 = vdwg.mxu0
    %1452 = vmatpush.bf16.msra.mxu0 0
    %1453 = vmatpush.bf16.msra.mxu0 0
    %1454 = vmatpush.bf16.msra.mxu0 0
    %1455 = vmatpush.bf16.msra.mxu0 0
    %1456 = vmatpush.bf16.msra.mxu0 %v382
    %1457 = vmatpush.bf16.msra.mxu0 %v380
    %1458 = vmatpush.bf16.msra.mxu0 %v378
    %1459 = vmatpush.bf16.msra.mxu0 %v376
    %1460 = vmatmul.bf16.gmra.mxu0 %v1437
    %v1461 = vpop.f32.mrf.mxu0
    %v1462 = vadd.f32 0.0, %v1461
    %v1463 = vpop.f32.mrf.mxu0
    %1464 = vdwg.mxu0
    %v1465 = vadd.f32 %v309, %v1449
    %v1466 = vadd.f32 %v310, %v1462
    %v1467 = vxor.u32 %v1465, 2147483648
    %v1468 = vxor.u32 %v1466, 2147483648
    %v1469 = vmul.f32 %v1467, 1.442695
    %v1470 = vpow.pop %v1469
    %v1471 = vmul.f32 %v1468, 1.442695
    %v1472 = vpow.pop %v1471
    %v1473 = vadd.f32 %v1470, 1.0
    %v1474 = vadd.f32 %v1472, 1.0
    %v1475 = vrcp.pop %v1473
    %v1476 = vmul.f32 %v1473, %v1475
    %v1477 = vsub.f32 1.0, %v1476
    %v1478 = vmul.f32 %v1475, %v1477
    %v1479 = vadd.f32 %v1475, %v1478
    %vm1480 = vweird.f32 %v1473
    %vm1481 = vweird.f32 %v1475
    %vm1482 = vmor %vm1480, %vm1481
    %v1483 = vsel %vm1482, %v1475, %v1479
    %v1484 = vand.u32 2147483647, %v1473
    %vm1485 = vcmp.eq.f32.partialorder %v1484, 8.507059e+37
    %v1486 = vand.u32 %v1473, 2147483648
    %v1487 = vor.u32 1.1754944e-38, %v1486
    %v1488 = vsel %vm1485, %v1487, %v1483
    %v1489 = vmul.f32 1.0, %v1488
    %v1490 = vrcp.pop %v1474
    %v1491 = vmul.f32 %v1474, %v1490
    %v1492 = vsub.f32 1.0, %v1491
    %v1493 = vmul.f32 %v1490, %v1492
    %v1494 = vadd.f32 %v1490, %v1493
    %vm1495 = vweird.f32 %v1474
    %vm1496 = vweird.f32 %v1490
    %vm1497 = vmor %vm1495, %vm1496
    %v1498 = vsel %vm1497, %v1490, %v1494
    %v1499 = vand.u32 2147483647, %v1474
    %vm1500 = vcmp.eq.f32.partialorder %v1499, 8.507059e+37
    %v1501 = vand.u32 %v1474, 2147483648
    %v1502 = vor.u32 1.1754944e-38, %v1501
    %v1503 = vsel %vm1500, %v1502, %v1498
    %v1504 = vmul.f32 1.0, %v1503
    %v1505 = vtanh.pop %v1466
    %v1506 = vmul.f32 %v1489, %v1340
    %1508 = vrot.lane.b32.xlu0 %v1505, 64
    %v1509 = vpop.permute.xlu0 %1508
    %v1511 = vmul.f32 %v1489, %v1509
    %1513 = vrot.lane.b32.xlu0 %v1511, 64
    %v1514 = vpop.permute.xlu0 %1513
    %v1516 = vadd.f32 %v1506, %v1514
    %v1517 = vtanh.pop %v1516
    %1519 = vrot.lane.b32.xlu0 %v1517, 64
    %v1520 = vpop.permute.xlu0 %1519
    %v1522 = vmul.f32 %v1504, %v1520
    %1524 = vrot.lane.b32.xlu0 %v1434, 64
    %v1525 = vpop.permute.xlu0 %1524
    %v1527 = vsel %vm391, %v1346, %v1525
    %v1528 = vpack.c.bf16 %v1527, %v1527
    %1529 = vmatpush.bf16.msra.mxu0 %v631
    %1530 = vmatpush.bf16.msra.mxu0 %v629
    %1531 = vmatpush.bf16.msra.mxu0 %v627
    %1532 = vmatpush.bf16.msra.mxu0 %v625
    %1533 = vmatpush.bf16.msra.mxu0 %v623
    %1534 = vmatpush.bf16.msra.mxu0 %v621
    %1535 = vmatpush.bf16.msra.mxu0 %v619
    %1536 = vmatpush.bf16.msra.mxu0 %v617
    %1537 = vmatmul.bf16.gmra.mxu0 %v1528
    %v1538 = vpop.f32.mrf.mxu0
    %v1539 = vadd.f32 %v347, %v1538
    %v1540 = vpop.f32.mrf.mxu0
    %1541 = vdwg.mxu0
    %1542 = vmatpush.bf16.msra.mxu0 %v632
    %1543 = vmatpush.bf16.msra.mxu0 %v630
    %1544 = vmatpush.bf16.msra.mxu0 %v628
    %1545 = vmatpush.bf16.msra.mxu0 %v626
    %1546 = vmatpush.bf16.msra.mxu0 %v624
    %1547 = vmatpush.bf16.msra.mxu0 %v622
    %1548 = vmatpush.bf16.msra.mxu0 %v620
    %1549 = vmatpush.bf16.msra.mxu0 %v618
    %1550 = vmatmul.bf16.gmra.mxu0 %v1528
    %v1551 = vpop.f32.mrf.mxu0
    %v1552 = vadd.f32 %v348, %v1551
    %v1553 = vpop.f32.mrf.mxu0
    %1554 = vdwg.mxu0
    %v1555 = vxor.u32 %v1539, 2147483648
    %v1556 = vxor.u32 %v1552, 2147483648
    %v1557 = vmul.f32 %v1555, 1.442695
    %v1558 = vpow.pop %v1557
    %v1559 = vmul.f32 %v1556, 1.442695
    %v1560 = vpow.pop %v1559
    %v1561 = vadd.f32 %v1558, 1.0
    %v1562 = vadd.f32 %v1560, 1.0
    %v1563 = vrcp.pop %v1561
    %v1564 = vmul.f32 %v1561, %v1563
    %v1565 = vsub.f32 1.0, %v1564
    %v1566 = vmul.f32 %v1563, %v1565
    %v1567 = vadd.f32 %v1563, %v1566
    %vm1568 = vweird.f32 %v1561
    %vm1569 = vweird.f32 %v1563
    %vm1570 = vmor %vm1568, %vm1569
    %v1571 = vsel %vm1570, %v1563, %v1567
    %v1572 = vand.u32 2147483647, %v1561
    %vm1573 = vcmp.eq.f32.partialorder %v1572, 8.507059e+37
    %v1574 = vand.u32 %v1561, 2147483648
    %v1575 = vor.u32 1.1754944e-38, %v1574
    %v1576 = vsel %vm1573, %v1575, %v1571
    %v1577 = vmul.f32 1.0, %v1576
    %v1578 = vrcp.pop %v1562
    %v1579 = vmul.f32 %v1562, %v1578
    %v1580 = vsub.f32 1.0, %v1579
    %v1581 = vmul.f32 %v1578, %v1580
    %v1582 = vadd.f32 %v1578, %v1581
    %vm1583 = vweird.f32 %v1562
    %vm1584 = vweird.f32 %v1578
    %vm1585 = vmor %vm1583, %vm1584
    %v1586 = vsel %vm1585, %v1578, %v1582
    %v1587 = vand.u32 2147483647, %v1562
    %vm1588 = vcmp.eq.f32.partialorder %v1587, 8.507059e+37
    %v1589 = vand.u32 %v1562, 2147483648
    %v1590 = vor.u32 1.1754944e-38, %v1589
    %v1591 = vsel %vm1588, %v1590, %v1586
    %v1592 = vmul.f32 1.0, %v1591
    %v1593 = vtanh.pop %v1552
    %v1594 = vmul.f32 %v1577, %v1428
    %1596 = vrot.lane.b32.xlu0 %v1593, 64
    %v1597 = vpop.permute.xlu0 %1596
    %v1599 = vmul.f32 %v1577, %v1597
    %1601 = vrot.lane.b32.xlu0 %v1599, 64
    %v1602 = vpop.permute.xlu0 %1601
    %v1604 = vadd.f32 %v1594, %v1602
    %v1605 = vtanh.pop %v1604
    %1607 = vrot.lane.b32.xlu0 %v1605, 64
    %v1608 = vpop.permute.xlu0 %1607
    %v1610 = vmul.f32 %v1592, %v1608
    %v1611 = vpack.c.bf16 %v1522, %v1522
    %v1613 = vsel %vm391, %v1611, 0
    %1615 = vmatpush.bf16.msra.mxu0 0
    %1616 = vmatpush.bf16.msra.mxu0 0
    %1617 = vmatpush.bf16.msra.mxu0 0
    %1618 = vmatpush.bf16.msra.mxu0 0
    %1619 = vmatpush.bf16.msra.mxu0 %v381
    %1620 = vmatpush.bf16.msra.mxu0 %v379
    %1621 = vmatpush.bf16.msra.mxu0 %v377
    %1622 = vmatpush.bf16.msra.mxu0 %v375
    %1623 = vmatmul.bf16.gmra.mxu0 %v1613
    %v1624 = vpop.f32.mrf.mxu0
    %v1625 = vadd.f32 0.0, %v1624
    %v1626 = vpop.f32.mrf.mxu0
    %1627 = vdwg.mxu0
    %1628 = vmatpush.bf16.msra.mxu0 0
    %1629 = vmatpush.bf16.msra.mxu0 0
    %1630 = vmatpush.bf16.msra.mxu0 0
    %1631 = vmatpush.bf16.msra.mxu0 0
    %1632 = vmatpush.bf16.msra.mxu0 %v382
    %1633 = vmatpush.bf16.msra.mxu0 %v380
    %1634 = vmatpush.bf16.msra.mxu0 %v378
    %1635 = vmatpush.bf16.msra.mxu0 %v376
    %1636 = vmatmul.bf16.gmra.mxu0 %v1613
    %v1637 = vpop.f32.mrf.mxu0
    %v1638 = vadd.f32 0.0, %v1637
    %v1639 = vpop.f32.mrf.mxu0
    %1640 = vdwg.mxu0
    %v1641 = vadd.f32 %v319, %v1625
    %v1642 = vadd.f32 %v320, %v1638
    %v1643 = vxor.u32 %v1641, 2147483648
    %v1644 = vxor.u32 %v1642, 2147483648
    %v1645 = vmul.f32 %v1643, 1.442695
    %v1646 = vpow.pop %v1645
    %v1647 = vmul.f32 %v1644, 1.442695
    %v1648 = vpow.pop %v1647
    %v1649 = vadd.f32 %v1646, 1.0
    %v1650 = vadd.f32 %v1648, 1.0
    %v1651 = vrcp.pop %v1649
    %v1652 = vmul.f32 %v1649, %v1651
    %v1653 = vsub.f32 1.0, %v1652
    %v1654 = vmul.f32 %v1651, %v1653
    %v1655 = vadd.f32 %v1651, %v1654
    %vm1656 = vweird.f32 %v1649
    %vm1657 = vweird.f32 %v1651
    %vm1658 = vmor %vm1656, %vm1657
    %v1659 = vsel %vm1658, %v1651, %v1655
    %v1660 = vand.u32 2147483647, %v1649
    %vm1661 = vcmp.eq.f32.partialorder %v1660, 8.507059e+37
    %v1662 = vand.u32 %v1649, 2147483648
    %v1663 = vor.u32 1.1754944e-38, %v1662
    %v1664 = vsel %vm1661, %v1663, %v1659
    %v1665 = vmul.f32 1.0, %v1664
    %v1666 = vrcp.pop %v1650
    %v1667 = vmul.f32 %v1650, %v1666
    %v1668 = vsub.f32 1.0, %v1667
    %v1669 = vmul.f32 %v1666, %v1668
    %v1670 = vadd.f32 %v1666, %v1669
    %vm1671 = vweird.f32 %v1650
    %vm1672 = vweird.f32 %v1666
    %vm1673 = vmor %vm1671, %vm1672
    %v1674 = vsel %vm1673, %v1666, %v1670
    %v1675 = vand.u32 2147483647, %v1650
    %vm1676 = vcmp.eq.f32.partialorder %v1675, 8.507059e+37
    %v1677 = vand.u32 %v1650, 2147483648
    %v1678 = vor.u32 1.1754944e-38, %v1677
    %v1679 = vsel %vm1676, %v1678, %v1674
    %v1680 = vmul.f32 1.0, %v1679
    %v1681 = vtanh.pop %v1642
    %v1682 = vmul.f32 %v1665, %v1516
    %1684 = vrot.lane.b32.xlu0 %v1681, 64
    %v1685 = vpop.permute.xlu0 %1684
    %v1687 = vmul.f32 %v1665, %v1685
    %1689 = vrot.lane.b32.xlu0 %v1687, 64
    %v1690 = vpop.permute.xlu0 %1689
    %v1692 = vadd.f32 %v1682, %v1690
    %v1693 = vtanh.pop %v1692
    %1695 = vrot.lane.b32.xlu0 %v1693, 64
    %v1696 = vpop.permute.xlu0 %1695
    %v1698 = vmul.f32 %v1680, %v1696
    %1700 = vrot.lane.b32.xlu0 %v1610, 64
    %v1701 = vpop.permute.xlu0 %1700
    %v1703 = vsel %vm391, %v1522, %v1701
    %v1704 = vpack.c.bf16 %v1703, %v1703
    %1705 = vmatpush.bf16.msra.mxu0 %v631
    %1706 = vmatpush.bf16.msra.mxu0 %v629
    %1707 = vmatpush.bf16.msra.mxu0 %v627
    %1708 = vmatpush.bf16.msra.mxu0 %v625
    %1709 = vmatpush.bf16.msra.mxu0 %v623
    %1710 = vmatpush.bf16.msra.mxu0 %v621
    %1711 = vmatpush.bf16.msra.mxu0 %v619
    %1712 = vmatpush.bf16.msra.mxu0 %v617
    %1713 = vmatmul.bf16.gmra.mxu0 %v1704
    %v1714 = vpop.f32.mrf.mxu0
    %v1715 = vadd.f32 %v347, %v1714
    %v1716 = vpop.f32.mrf.mxu0
    %1717 = vdwg.mxu0
    %1718 = vmatpush.bf16.msra.mxu0 %v632
    %1719 = vmatpush.bf16.msra.mxu0 %v630
    %1720 = vmatpush.bf16.msra.mxu0 %v628
    %1721 = vmatpush.bf16.msra.mxu0 %v626
    %1722 = vmatpush.bf16.msra.mxu0 %v624
    %1723 = vmatpush.bf16.msra.mxu0 %v622
    %1724 = vmatpush.bf16.msra.mxu0 %v620
    %1725 = vmatpush.bf16.msra.mxu0 %v618
    %1726 = vmatmul.bf16.gmra.mxu0 %v1704
    %v1727 = vpop.f32.mrf.mxu0
    %v1728 = vadd.f32 %v348, %v1727
    %v1729 = vpop.f32.mrf.mxu0
    %1730 = vdwg.mxu0
    %v1731 = vxor.u32 %v1715, 2147483648
    %v1732 = vxor.u32 %v1728, 2147483648
    %v1733 = vmul.f32 %v1731, 1.442695
    %v1734 = vpow.pop %v1733
    %v1735 = vmul.f32 %v1732, 1.442695
    %v1736 = vpow.pop %v1735
    %v1737 = vadd.f32 %v1734, 1.0
    %v1738 = vadd.f32 %v1736, 1.0
    %v1739 = vrcp.pop %v1737
    %v1740 = vmul.f32 %v1737, %v1739
    %v1741 = vsub.f32 1.0, %v1740
    %v1742 = vmul.f32 %v1739, %v1741
    %v1743 = vadd.f32 %v1739, %v1742
    %vm1744 = vweird.f32 %v1737
    %vm1745 = vweird.f32 %v1739
    %vm1746 = vmor %vm1744, %vm1745
    %v1747 = vsel %vm1746, %v1739, %v1743
    %v1748 = vand.u32 2147483647, %v1737
    %vm1749 = vcmp.eq.f32.partialorder %v1748, 8.507059e+37
    %v1750 = vand.u32 %v1737, 2147483648
    %v1751 = vor.u32 1.1754944e-38, %v1750
    %v1752 = vsel %vm1749, %v1751, %v1747
    %v1753 = vmul.f32 1.0, %v1752
    %v1754 = vrcp.pop %v1738
    %v1755 = vmul.f32 %v1738, %v1754
    %v1756 = vsub.f32 1.0, %v1755
    %v1757 = vmul.f32 %v1754, %v1756
    %v1758 = vadd.f32 %v1754, %v1757
    %vm1759 = vweird.f32 %v1738
    %vm1760 = vweird.f32 %v1754
    %vm1761 = vmor %vm1759, %vm1760
    %v1762 = vsel %vm1761, %v1754, %v1758
    %v1763 = vand.u32 2147483647, %v1738
    %vm1764 = vcmp.eq.f32.partialorder %v1763, 8.507059e+37
    %v1765 = vand.u32 %v1738, 2147483648
    %v1766 = vor.u32 1.1754944e-38, %v1765
    %v1767 = vsel %vm1764, %v1766, %v1762
    %v1768 = vmul.f32 1.0, %v1767
    %v1769 = vtanh.pop %v1728
    %v1770 = vmul.f32 %v1753, %v1604
    %1772 = vrot.lane.b32.xlu0 %v1769, 64
    %v1773 = vpop.permute.xlu0 %1772
    %v1775 = vmul.f32 %v1753, %v1773
    %1777 = vrot.lane.b32.xlu0 %v1775, 64
    %v1778 = vpop.permute.xlu0 %1777
    %v1780 = vadd.f32 %v1770, %v1778
    %v1781 = vtanh.pop %v1780
    %1783 = vrot.lane.b32.xlu0 %v1781, 64
    %v1784 = vpop.permute.xlu0 %1783
    %v1786 = vmul.f32 %v1768, %v1784
    %1788 = vrot.lane.b32.xlu0 %v1786, 64
    %v1789 = vpop.permute.xlu0 %1788
    %v1791 = vsel %vm391, %v1698, %v1789
    %v1792 = vpack.c.bf16 %v1791, %v1791
    %1793 = vmatpush.bf16.msra.mxu0 %v631
    %1794 = vmatpush.bf16.msra.mxu0 %v629
    %1795 = vmatpush.bf16.msra.mxu0 %v627
    %1796 = vmatpush.bf16.msra.mxu0 %v625
    %1797 = vmatpush.bf16.msra.mxu0 %v623
    %1798 = vmatpush.bf16.msra.mxu0 %v621
    %1799 = vmatpush.bf16.msra.mxu0 %v619
    %1800 = vmatpush.bf16.msra.mxu0 %v617
    %1801 = vmatmul.bf16.gmra.mxu0 %v1792
    %v1802 = vpop.f32.mrf.mxu0
    %v1803 = vadd.f32 %v347, %v1802
    %v1804 = vpop.f32.mrf.mxu0
    %1805 = vdwg.mxu0
    %1806 = vmatpush.bf16.msra.mxu0 %v632
    %1807 = vmatpush.bf16.msra.mxu0 %v630
    %1808 = vmatpush.bf16.msra.mxu0 %v628
    %1809 = vmatpush.bf16.msra.mxu0 %v626
    %1810 = vmatpush.bf16.msra.mxu0 %v624
    %1811 = vmatpush.bf16.msra.mxu0 %v622
    %1812 = vmatpush.bf16.msra.mxu0 %v620
    %1813 = vmatpush.bf16.msra.mxu0 %v618
    %1814 = vmatmul.bf16.gmra.mxu0 %v1792
    %v1815 = vpop.f32.mrf.mxu0
    %v1816 = vadd.f32 %v348, %v1815
    %v1817 = vpop.f32.mrf.mxu0
    %1818 = vdwg.mxu0
    %v1819 = vxor.u32 %v1803, 2147483648
    %v1820 = vxor.u32 %v1816, 2147483648
    %v1821 = vmul.f32 %v1819, 1.442695
    %v1822 = vpow.pop %v1821
    %v1823 = vmul.f32 %v1820, 1.442695
    %v1824 = vpow.pop %v1823
    %v1825 = vadd.f32 %v1822, 1.0
    %v1826 = vadd.f32 %v1824, 1.0
    %v1827 = vrcp.pop %v1825
    %v1828 = vmul.f32 %v1825, %v1827
    %v1829 = vsub.f32 1.0, %v1828
    %v1830 = vmul.f32 %v1827, %v1829
    %v1831 = vadd.f32 %v1827, %v1830
    %vm1832 = vweird.f32 %v1825
    %vm1833 = vweird.f32 %v1827
    %vm1834 = vmor %vm1832, %vm1833
    %v1835 = vsel %vm1834, %v1827, %v1831
    %v1836 = vand.u32 2147483647, %v1825
    %vm1837 = vcmp.eq.f32.partialorder %v1836, 8.507059e+37
    %v1838 = vand.u32 %v1825, 2147483648
    %v1839 = vor.u32 1.1754944e-38, %v1838
    %v1840 = vsel %vm1837, %v1839, %v1835
    %v1841 = vmul.f32 1.0, %v1840
    %v1842 = vrcp.pop %v1826
    %v1843 = vmul.f32 %v1826, %v1842
    %v1844 = vsub.f32 1.0, %v1843
    %v1845 = vmul.f32 %v1842, %v1844
    %v1846 = vadd.f32 %v1842, %v1845
    %vm1847 = vweird.f32 %v1826
    %vm1848 = vweird.f32 %v1842
    %vm1849 = vmor %vm1847, %vm1848
    %v1850 = vsel %vm1849, %v1842, %v1846
    %v1851 = vand.u32 2147483647, %v1826
    %vm1852 = vcmp.eq.f32.partialorder %v1851, 8.507059e+37
    %v1853 = vand.u32 %v1826, 2147483648
    %v1854 = vor.u32 1.1754944e-38, %v1853
    %v1855 = vsel %vm1852, %v1854, %v1850
    %v1856 = vmul.f32 1.0, %v1855
    %v1857 = vtanh.pop %v1816
    %v1858 = vmul.f32 %v1841, %v1780
    %1860 = vrot.lane.b32.xlu0 %v1857, 64
    %v1861 = vpop.permute.xlu0 %1860
    %v1863 = vmul.f32 %v1841, %v1861
    %1865 = vrot.lane.b32.xlu0 %v1863, 64
    %v1866 = vpop.permute.xlu0 %1865
    %v1868 = vadd.f32 %v1858, %v1866
    %v1869 = vtanh.pop %v1868
    %1871 = vrot.lane.b32.xlu0 %v1869, 64
    %v1872 = vpop.permute.xlu0 %1871
    %v1874 = vmul.f32 %v1856, %v1872
    %v1875 = vrot.slane %v906, 6
    %v1877 = vrot.slane %v1082, 4
    %v1879 = vrot.slane %v1258, 2
    %v1881 = vrot.slane %v1610, 6
    %v1883 = vrot.slane %v1786, 4
    %v1886 = vrot.slane %v1874, 2
    %vm1888 = vcmask 1041408
    %v1889 = vsel %vm1888, %v730, %v1875
    %vm1890 = vcmask 1043456
    %v1891 = vsel %vm1890, %v1889, %v1877
    %vm1892 = vcmask 1045504
    %v1893 = vsel %vm1892, %v1891, %v1879
    %v1894 = vsel %vm1888, %v1434, %v1881
    %v1895 = vsel %vm1890, %v1894, %v1883
    %v1896 = vsel %vm1892, %v1895, %v1886
    %v1897 = vpack.c.bf16 %v1896, %v1893
    %v1898 = vld [vmem:[%s8] sm:$0xf]
    %v1899 = vld [vmem:[%s8 + $0x4] sm:$0xf]
    %v1900 = vld [vmem:[%s8 + $0x8] sm:$0xf]
    %v1901 = vld [vmem:[%s8 + $0xc] sm:$0xf]
    %v1902 = vld [vmem:[%s8 + $0x10] sm:$0xf]
    %v1903 = vld [vmem:[%s8 + $0x14] sm:$0xf]
    %v1904 = vld [vmem:[%s8 + $0x18] sm:$0xf]
    %v1905 = vld [vmem:[%s8 + $0x1c] sm:$0xf]
    %v1906 = vld [vmem:[%s9] sm:$0x1]
    %v1908 = vperm.slane %v1906, 0
    %v1918 = vunpack.c.l.b16 %v1898
    %v1919 = vunpack.c.l.b16 %v1899
    %v1920 = vunpack.c.l.b16 %v1900
    %v1921 = vunpack.c.l.b16 %v1901
    %v1922 = vunpack.c.l.b16 %v1902
    %v1923 = vunpack.c.l.b16 %v1903
    %v1924 = vunpack.c.l.b16 %v1904
    %v1925 = vunpack.c.l.b16 %v1905
    %v1926 = vpack.c.b16 %v1919, %v1918
    %v1927 = vpack.c.b16 %v1921, %v1920
    %v1928 = vpack.c.b16 %v1923, %v1922
    %v1929 = vpack.c.b16 %v1925, %v1924
    %v1935 = vsel %vm391, %v1897, 0
    %1937 = vmatpush.bf16.msra.mxu0 0
    %1938 = vmatpush.bf16.msra.mxu0 0
    %1939 = vmatpush.bf16.msra.mxu0 0
    %1940 = vmatpush.bf16.msra.mxu0 0
    %1941 = vmatpush.bf16.msra.mxu0 %v1929
    %1942 = vmatpush.bf16.msra.mxu0 %v1928
    %1943 = vmatpush.bf16.msra.mxu0 %v1927
    %1944 = vmatpush.bf16.msra.mxu0 %v1926
    %1945 = vmatmul.bf16.gmra.mxu0 %v1935
    %v1946 = vpop.f32.mrf.mxu0
    %v1947 = vadd.f32 %v1908, %v1946
    %v1948 = vpop.f32.mrf.mxu0
    %v1949 = vadd.f32 %v1908, %v1948
    %1950 = vdwg.mxu0
    %1951 = vst.msk [vmem:[#allocation10] sm:$0xff] %vm134, %v1947
    %1952 = vst.msk [vmem:[#allocation10 + $0x8] sm:$0xff] %vm134, %v1949
    // Predicated region
    $region58: #{tpu_custom_call.1} parent=1 // pred_check
      _
    $region59: #{tpu_custom_call.1} parent=1 // pred_check_branch
      %1954 = sbr.rel (0) target = $region61
    $region60: #{tpu_custom_call.1} parent=1 // pred_region
      %1956 = vsyncadd [#allocation4], 0
      %s1957 = sshll.u32 [#allocation10], 4
      %s1958 = int_to_ptr.vmem [resolvable:$true] %s1957
      %s1959 = sshll.u32 %s10, 4
      %s1960 = int_to_ptr.hbm [resolvable:$true] %s1959
      %1965 = dma.vmem_to_hbm [thread:$0]  %s1958, 256, %s1960, [#allocation4], 128, 128, 8
    $region61: #{tpu_custom_call.1} parent=1 // pred_fallthru
      _
    // Predicated region
    $region62: #{tpu_custom_call.1} parent=1 // pred_check
      _
    $region63: #{tpu_custom_call.1} parent=1 // pred_check_branch
      %1967 = sbr.rel (0) target = $region65
    $region64: #{tpu_custom_call.1} parent=1 // pred_region
      %1969 = dma.done [#allocation4], 256
    $region65: #{tpu_custom_call.1} parent=1 // pred_fallthru
      _
    %1970 = vsyncpa [#allocation3], 1
    %1971 = vsyncpa [#allocation6], 1
    %1972 = vsyncpa [#allocation9], 1
    %1973 = vsyncpa [#allocation4], 1

</llo_original>
